<compile_context>
chip_gen: v6e
topology: v6e:2x2x1
jax: 0.10.0
libtpu: 0.0.40
codegen_flags: <defaults>
</compile_context>

<pallas_src>
import functools

import jax
import jax.numpy as jnp
from jax.experimental import pallas as pl
from jax.experimental.pallas import tpu as pltpu

EPS = 1e-5
NUM_LABELS = 10
# ConvN stages: (cin, cout, num_resid_blocks, stride_of_first_block)
STAGE_CONFIGS = ((64, 64, 3, 1), (64, 128, 4, 2), (128, 256, 6, 2), (256, 512, 3, 2))


def _round_up(x, m):
    return ((x + m - 1) // m) * m


def _default_vmem_limit():
    # v5e/v6e have 128 MiB VMEM per TensorCore, v7x has 64 MiB.  Ask for 3/4 of
    # physical (capped at 96 MiB) so the request is valid on every generation.
    try:
        cap = int(pltpu.get_tpu_info().vmem_capacity_bytes)
    except Exception:
        cap = 64 * 1024 * 1024
    return min(cap * 3 // 4, 96 * 1024 * 1024)


_VMEM_LIMIT = _default_vmem_limit()


def _cparams(*sem):
    return pltpu.CompilerParams(dimension_semantics=sem,
                                vmem_limit_bytes=_VMEM_LIMIT)


# ----------------------------- Pallas kernels -----------------------------

def _mm_kernel(apply_relu, a_ref, b_ref, s_ref, t_ref, o_ref):
    # out = relu?( (A @ B) * scale + bias ) -- A/B bf16, f32 accumulate.
    acc = jnp.dot(a_ref[...], b_ref[...], preferred_element_type=jnp.float32)
    y = acc * s_ref[...] + t_ref[...]
    if apply_relu:
        y = jnp.maximum(y, 0.0)
    o_ref[...] = y.astype(o_ref.dtype)


def _dconv3x3_kernel(apply_relu, has_res, H, Wp, x_ref, w_ref, s_ref, t_ref, *refs):
    # Direct 3x3 stride-1 conv on one image.
    #   x_ref: (1, L, Cin)  flattened zero-padded image, row width Wp = W + 2
    #   w_ref: (3, 3, Cin, Cout) bf16 taps
    #   s_ref/t_ref: (1, Cout) folded BN scale/bias (f32)
    #   optional r_ref: (1, H*Wp, Cout) residual (bf16); o_ref: (1, H*Wp, Cout)
    if has_res:
        r_ref, o_ref = refs
    else:
        (o_ref,) = refs
    M = H * Wp
    Cout = o_ref.shape[-1]
    acc = jnp.zeros((M, Cout), jnp.float32)
    for dy in range(3):
        for dx in range(3):
            off = dy * Wp + dx
            patch = x_ref[0, off:off + M, :]        # contiguous tap slice (M, Cin)
            acc = acc + jnp.dot(patch, w_ref[dy, dx],
                                preferred_element_type=jnp.float32)
    if has_res:
        acc = acc + r_ref[0].astype(jnp.float32)    # residual fused before BN
    y = acc * s_ref[...] + t_ref[...]
    if apply_relu:
        y = jnp.maximum(y, 0.0)
    o_ref[0] = y.astype(o_ref.dtype)


def _max_reduce_kernel(x_ref, o_ref):
    o_ref[...] = jnp.max(x_ref[...], axis=0).astype(o_ref.dtype)


def _mean_reduce_kernel(x_ref, o_ref):
    o_ref[...] = jnp.mean(x_ref[...].astype(jnp.float32), axis=0).astype(o_ref.dtype)


# ----------------------------- Pallas wrappers -----------------------------

def matmul_fused(a, b, scale, bias, relu, tm=1024, tn=256, out_dtype=jnp.bfloat16):
    """out[M,N] = relu?( (A @ B) * scale[N] + bias[N] ); bf16 operands, f32 acc."""
    M, K = a.shape
    K2, N = b.shape
    assert K == K2
    a = a.astype(jnp.bfloat16)
    b = b.astype(jnp.bfloat16)
    tm_eff = min(tm, _round_up(M, 8))
    Mp = _round_up(M, tm_eff)
    if Mp != M:
        a = jnp.pad(a, ((0, Mp - M), (0, 0)))
    tn_eff = min(tn, N) if (N % 128 == 0) else N
    if N % tn_eff != 0:
        tn_eff = N
    out = pl.pallas_call(
        functools.partial(_mm_kernel, relu),
        out_shape=jax.ShapeDtypeStruct((Mp, N), out_dtype),
        grid=(Mp // tm_eff, N // tn_eff),
        in_specs=[
            pl.BlockSpec((tm_eff, K), lambda i, j: (i, 0)),
            pl.BlockSpec((K, tn_eff), lambda i, j: (0, j)),
            pl.BlockSpec((1, tn_eff), lambda i, j: (0, j)),
            pl.BlockSpec((1, tn_eff), lambda i, j: (0, j)),
        ],
        out_specs=pl.BlockSpec((tm_eff, tn_eff), lambda i, j: (i, j)),
        compiler_params=_cparams("parallel", "parallel"),
    )(a, b, scale.reshape(1, N).astype(jnp.float32),
      bias.reshape(1, N).astype(jnp.float32))
    return out[:M]


def conv3x3_s1(x, w_taps, scale, bias, relu, residual=None):
    """Direct (no-im2col) 3x3 / stride 1 / pad 1 conv, fused BN + ReLU (+ residual).

    grid=(N,): one image per grid step.  The padded image is flattened row-major
    so every tap is a contiguous slice; the 2 extra output columns per row are
    garbage and sliced off after the call.
    """
    N, H, W, Cin = x.shape
    Cout = w_taps.shape[-1]
    Wp = W + 2
    M = H * Wp
    L = (H + 3) * Wp      # one extra zero row keeps all tap reads in-bounds
    xf = jnp.pad(x.astype(jnp.bfloat16),
                 ((0, 0), (1, 2), (1, 1), (0, 0))).reshape(N, L, Cin)
    args = [xf, w_taps.astype(jnp.bfloat16),
            scale.reshape(1, Cout).astype(jnp.float32),
            bias.reshape(1, Cout).astype(jnp.float32)]
    in_specs = [
        pl.BlockSpec((1, L, Cin), lambda n: (n, 0, 0)),
        pl.BlockSpec((3, 3, Cin, Cout), lambda n: (0, 0, 0, 0)),
        pl.BlockSpec((1, Cout), lambda n: (0, 0)),
        pl.BlockSpec((1, Cout), lambda n: (0, 0)),
    ]
    if residual is not None:
        rf = jnp.pad(residual.astype(jnp.bfloat16),
                     ((0, 0), (0, 0), (0, 2), (0, 0))).reshape(N, M, Cout)
        args.append(rf)
        in_specs.append(pl.BlockSpec((1, M, Cout), lambda n: (n, 0, 0)))
    out = pl.pallas_call(
        functools.partial(_dconv3x3_kernel, relu, residual is not None, H, Wp),
        out_shape=jax.ShapeDtypeStruct((N, M, Cout), jnp.bfloat16),
        grid=(N,),
        in_specs=in_specs,
        out_specs=pl.BlockSpec((1, M, Cout), lambda n: (n, 0, 0)),
        compiler_params=_cparams("parallel"),
    )(*args)
    return out.reshape(N, H, Wp, Cout)[:, :, :W, :]


def pool_reduce(x, op, tm=512):
    """Reduce window axis: x (R, M, C) -> (M, C) via max/mean over axis 0."""
    R, M, C = x.shape
    out_dtype = x.dtype if op == "max" else jnp.float32
    tm_eff = min(tm, _round_up(M, 8))
    Mp = _round_up(M, tm_eff)
    if Mp != M:
        x = jnp.pad(x, ((0, 0), (0, Mp - M), (0, 0)))
    kernel = _max_reduce_kernel if op == "max" else _mean_reduce_kernel
    out = pl.pallas_call(
        kernel,
        out_shape=jax.ShapeDtypeStruct((Mp, C), out_dtype),
        grid=(Mp // tm_eff,),
        in_specs=[pl.BlockSpec((R, tm_eff, C), lambda i: (0, i, 0))],
        out_specs=pl.BlockSpec((tm_eff, C), lambda i: (i, 0)),
        compiler_params=_cparams("parallel"),
    )(x)
    return out[:M]


# ----------------------------- conv glue (im2col, strided convs only) -------

def _im2col(x, kh, kw, stride, pad):
    """x: (N,H,W,C) NHWC -> patches (N*Ho*Wo, kh*kw*C) ordered (kh, kw, C)."""
    n, h, w, c = x.shape
    if pad > 0:
        x = jnp.pad(x, ((0, 0), (pad, pad), (pad, pad), (0, 0)))
    hp, wp = h + 2 * pad, w + 2 * pad
    ho = (hp - kh) // stride + 1
    wo = (wp - kw) // stride + 1
    cols = []
    for dy in range(kh):
        for dx in range(kw):
            cols.append(x[:, dy:dy + stride * (ho - 1) + 1:stride,
                          dx:dx + stride * (wo - 1) + 1:stride, :])
    patches = jnp.stack(cols, axis=3).reshape(n * ho * wo, kh * kw * c)
    return patches, (n, ho, wo)


def conv_via_matmul(x, bmat, kh, kw, stride, pad, scale, bias, relu):
    """Conv via bf16 im2col + Pallas matmul with fused per-channel affine/relu."""
    cout = bmat.shape[1]
    a, (n, ho, wo) = _im2col(x.astype(jnp.bfloat16), kh, kw, stride, pad)
    out = matmul_fused(a, bmat, scale, bias, relu)
    return out.reshape(n, ho, wo, cout)


def maxpool_3x3_s2_p1(x):
    n, h, w, c = x.shape
    xp = jnp.pad(x, ((0, 0), (1, 1), (1, 1), (0, 0)), constant_values=-1e30)
    ho = (h + 2 - 3) // 2 + 1
    wo = (w + 2 - 3) // 2 + 1
    slices = []
    for dy in range(3):
        for dx in range(3):
            slices.append(xp[:, dy:dy + 2 * (ho - 1) + 1:2,
                             dx:dx + 2 * (wo - 1) + 1:2, :])
    stacked = jnp.stack(slices, axis=0).reshape(9, n * ho * wo, c)
    return pool_reduce(stacked, "max").reshape(n, ho, wo, c)


# ----------------------------- parameters -----------------------------

def _init_conv(key, cout, cin, kh, kw):
    k1, k2 = jax.random.split(key)
    std = (2.0 / (cin * kh * kw)) ** 0.5
    return {"w": std * jax.random.normal(k1, (cout, cin, kh, kw), jnp.float32),
            "b": 0.01 * jax.random.normal(k2, (cout,), jnp.float32)}


def _init_bn(key, c):
    k1, k2 = jax.random.split(key)
    return {"gamma": 1.0 + 0.1 * jax.random.normal(k1, (c,), jnp.float32),
            "beta": 0.1 * jax.random.normal(k2, (c,), jnp.float32)}
    # running_mean = 0, running_var = 1 (PyTorch defaults) are folded implicitly.


def build_params(key, num_labels):
    keys = iter(jax.random.split(key, 256))
    params = {"conv1": {"conv": _init_conv(next(keys), 64, 3, 7, 7),
                        "bn": _init_bn(next(keys), 64)},
              "stages": []}
    for cin, cout, nblocks, _stride in STAGE_CONFIGS:
        blocks = []
        for i in range(nblocks):
            ci = cin if i == 0 else cout
            blk = {"conv_a": _init_conv(next(keys), cout, ci, 3, 3),
                   "bn_a": _init_bn(next(keys), cout),
                   "conv_b": _init_conv(next(keys), cout, cout, 3, 3),
                   "bn_out": _init_bn(next(keys), cout)}
            if ci != cout:
                blk["proj"] = _init_conv(next(keys), cout, ci, 1, 1)
            blocks.append(blk)
        params["stages"].append(blocks)
    k1, k2 = jax.random.split(next(keys))
    params["fc"] = {"w": (1.0 / 512.0 ** 0.5) *
                         jax.random.normal(k1, (num_labels, 512), jnp.float32),
                    "b": 0.01 * jax.random.normal(k2, (num_labels,), jnp.float32)}
    return params


def prepare_params(params):
    """Fold BN into per-channel scale/bias, pre-transpose and bf16-cast weights
    once, outside the forward pass (no per-call weight shuffles)."""
    inv = 1.0 / jnp.sqrt(1.0 + EPS)               # running_var = 1, mean = 0

    def fold(conv_p, bn_p):
        s = bn_p["gamma"] * inv
        return s, s * conv_p["b"] + bn_p["beta"]

    prep = {"stages": []}
    c1, bn1 = params["conv1"]["conv"], params["conv1"]["bn"]
    s1, t1 = fold(c1, bn1)
    prep["conv1"] = {
        "bmat": jnp.transpose(c1["w"], (2, 3, 1, 0)).reshape(-1, 64).astype(jnp.bfloat16),
        "scale": s1, "bias": t1}
    for (cin, cout, nblocks, stride0), blocks in zip(STAGE_CONFIGS, params["stages"]):
        pblocks = []
        for i, blk in enumerate(blocks):
            stride = stride0 if i == 0 else 1
            sa, ta = fold(blk["conv_a"], blk["bn_a"])
            sb, tb = fold(blk["conv_b"], blk["bn_out"])
            wa = jnp.transpose(blk["conv_a"]["w"], (2, 3, 1, 0)).astype(jnp.bfloat16)
            p = {"scale_a": sa, "bias_a": ta, "scale_b": sb, "bias_b": tb,
                 "wb_taps": jnp.transpose(blk["conv_b"]["w"],
                                          (2, 3, 1, 0)).astype(jnp.bfloat16)}
            if stride == 1:
                p["wa_taps"] = wa                          # direct-conv kernel
            else:
                p["wa_mat"] = wa.reshape(-1, cout)         # im2col matmul kernel
            if "proj" in blk:
                pj = blk["proj"]
                p["proj_mat"] = jnp.transpose(pj["w"], (2, 3, 1, 0)).reshape(
                    -1, cout).astype(jnp.bfloat16)
                p["proj_scale"] = jnp.ones((cout,), jnp.float32)
                p["proj_bias"] = pj["b"]
            pblocks.append(p)
        prep["stages"].append(pblocks)
    prep["fc"] = {"wmat": params["fc"]["w"].T.astype(jnp.bfloat16),
                  "scale": jnp.ones((params["fc"]["w"].shape[0],), jnp.float32),
                  "bias": params["fc"]["b"]}
    return prep


# ----------------------------- forward pass -----------------------------

def _resid_block(x, pblk, cout, stride):
    # h = relu(bn_a(conv_a(x)))           (BN folded into conv epilogue)
    if stride == 1:
        h = conv3x3_s1(x, pblk["wa_taps"], pblk["scale_a"], pblk["bias_a"], relu=True)
    else:
        h = conv_via_matmul(x, pblk["wa_mat"], 3, 3, stride, 1,
                            pblk["scale_a"], pblk["bias_a"], relu=True)
    # r = proj(x) (+bias)  or identity
    if "proj_mat" in pblk:
        r = conv_via_matmul(x, pblk["proj_mat"], 1, 1, stride, 0,
                            pblk["proj_scale"], pblk["proj_bias"], relu=False)
    else:
        r = x
    # out = relu( bn_out( r + conv_b(h) ) )  -- residual + BN + ReLU fused into
    # the conv_b kernel epilogue (no extra HBM pass).
    return conv3x3_s1(h, pblk["wb_taps"], pblk["scale_b"], pblk["bias_b"],
                      relu=True, residual=r)


def _forward_impl(prep, x_nchw):
    x = jnp.transpose(x_nchw, (0, 2, 3, 1)).astype(jnp.bfloat16)   # NCHW -> NHWC
    # Conv1: conv7x7/2 + BN + ReLU, then MaxPool3x3/2
    p1 = prep["conv1"]
    x = conv_via_matmul(x, p1["bmat"], 7, 7, 2, 3, p1["scale"], p1["bias"], relu=True)
    x = maxpool_3x3_s2_p1(x)
    # Residual stages
    for (cin, cout, nblocks, stride0), pblocks in zip(STAGE_CONFIGS, prep["stages"]):
        for i in range(nblocks):
            x = _resid_block(x, pblocks[i], cout, stride0 if i == 0 else 1)
    # AvgPool2d(7, stride=1) on the 7x7 map -> (N, 512)
    n, h, w, c = x.shape
    xr = jnp.transpose(x.reshape(n, h * w, c), (1, 0, 2)).astype(jnp.float32)
    feat = pool_reduce(xr, "mean")                                 # (N, 512) f32
    # Linear(512, num_labels)
    fc = prep["fc"]
    logits = matmul_fused(feat, fc["wmat"], fc["scale"], fc["bias"],
                          relu=False, out_dtype=jnp.float32)
    return logits


_forward_jit = jax.jit(_forward_impl)


def forward(prep, x_nchw, target=None):
    logits = _forward_jit(prep, x_nchw)
    if target is None:
        loss = None
    else:
        logp = jax.nn.log_softmax(logits, axis=-1)
        loss = -jnp.mean(jnp.take_along_axis(
            logp, target[:, None].astype(jnp.int32), axis=1))
    return logits, loss


# ----------------------------- self-test -----------------------------

def _selftest_conv3x3():
    """Direct-conv kernel vs XLA conv (same bf16 inputs), loose tolerance."""
    key = jax.random.PRNGKey(42)
    k1, k2, k3, k4, k5 = jax.random.split(key, 5)
    N, H, W, Cin, Cout = 1, 10, 12, 64, 128
    x = jax.random.normal(k1, (N, H, W, Cin), jnp.float32).astype(jnp.bfloat16)
    w = (jax.random.normal(k2, (3, 3, Cin, Cout), jnp.float32) * 0.1).astype(jnp.bfloat16)
    s = 1.0 + 0.1 * jax.random.normal(k3, (Cout,), jnp.float32)
    t = 0.1 * jax.random.normal(k4, (Cout,), jnp.float32)
    r = jax.random.normal(k5, (N, H, W, Cout), jnp.float32).astype(jnp.bfloat16)
    got = conv3x3_s1(x, w, s, t, relu=True, residual=r).astype(jnp.float32)
    ref = jax.lax.conv_general_dilated(
        x.astype(jnp.float32), w.astype(jnp.float32),
        window_strides=(1, 1), padding="SAME",
        dimension_numbers=("NHWC", "HWIO", "NHWC"),
        precision=jax.lax.Precision.HIGHEST)
    ref = jnp.maximum((ref + r.astype(jnp.float32)) * s + t, 0.0)
    rel = float(jnp.max(jnp.abs(got - ref) / (1.0 + jnp.abs(ref))))
    assert rel < 2e-2, f"conv3x3 self-test failed, rel err {rel}"


# ----------------------------- main -----------------------------

if __name__ == "__main__":
    key = jax.random.PRNGKey(0)
    pkey, xkey = jax.random.split(key)
    params = build_params(pkey, NUM_LABELS)
    prep = prepare_params(params)

    _selftest_conv3x3()

    # Spatial size 224 is forced by AvgPool2d(7) + Linear(512, .) in the module.
    x = jax.random.normal(xkey, (2, 3, 224, 224), jnp.float32)
    logits, loss = forward(prep, x, target=None)
    logits = jax.block_until_ready(logits)
    assert logits.shape == (2, NUM_LABELS)
    assert loss is None
    assert bool(jnp.all(jnp.isfinite(logits)))

    # Also exercise the cross-entropy (target is not None) path.
    tgt = jnp.array([1, 3], jnp.int32)
    _, loss2 = forward(prep, x, target=tgt)
    assert bool(jnp.isfinite(loss2))

    print("KERNEL_OK")
</pallas_src>

<mosaic_0001>
module attributes {stable_mosaic.version = 11 : i64} {
  func.func @_dconv3x3_kernel(%arg0: i32, %arg1: memref<1x182x64xbf16, #tpu.memory_space<vmem>>, %arg2: memref<3x3x64x128xbf16, #tpu.memory_space<vmem>>, %arg3: memref<1x128xf32, #tpu.memory_space<vmem>>, %arg4: memref<1x128xf32, #tpu.memory_space<vmem>>, %arg5: memref<1x140x128xbf16, #tpu.memory_space<vmem>>, %arg6: memref<1x140x128xbf16, #tpu.memory_space<vmem>>) attributes {dimension_semantics = [#tpu.dimension_semantics<parallel>], iteration_bounds = array<i64: 1>, scalar_prefetch = 0 : i64, scratch_operands = 0 : i64, tpu.core_type = #tpu.core_type<tc>, window_params = [{transform_indices = @transform_0, window_bounds = array<i64: 1, 182, 64>}, {pipeline_mode = #tpu.pipeline_mode<synchronous>, transform_indices = @transform_1, window_bounds = array<i64: 3, 3, 64, 128>}, {pipeline_mode = #tpu.pipeline_mode<synchronous>, transform_indices = @transform_2, window_bounds = array<i64: 1, 128>}, {pipeline_mode = #tpu.pipeline_mode<synchronous>, transform_indices = @transform_3, window_bounds = array<i64: 1, 128>}, {transform_indices = @transform_4, window_bounds = array<i64: 1, 140, 128>}, {transform_indices = @transform_5, window_bounds = array<i64: 1, 140, 128>}]} {
    %cst = arith.constant 0.000000e+00 : f32
    %0 = vector.broadcast %cst : f32 to vector<140x128xf32>
    %c0 = arith.constant 0 : index
    %c0_0 = arith.constant 0 : index
    %c0_1 = arith.constant 0 : index
    %1 = vector.load %arg1[%c0, %c0_0, %c0_1] : memref<1x182x64xbf16, #tpu.memory_space<vmem>>, vector<1x140x64xbf16>
    %2 = vector.shape_cast %1 : vector<1x140x64xbf16> to vector<140x64xbf16>
    %c0_2 = arith.constant 0 : index
    %c0_3 = arith.constant 0 : index
    %c0_4 = arith.constant 0 : index
    %c0_5 = arith.constant 0 : index
    %3 = vector.load %arg2[%c0_2, %c0_3, %c0_4, %c0_5] : memref<3x3x64x128xbf16, #tpu.memory_space<vmem>>, vector<1x1x64x128xbf16>
    %4 = vector.shape_cast %3 : vector<1x1x64x128xbf16> to vector<64x128xbf16>
    %cst_6 = arith.constant dense<0.000000e+00> : vector<140x128xf32>
    %5 = tpu.matmul %2, %4, %cst_6 {dimension_numbers = #tpu.dot_dimension_numbers<[1], [0], [0], [1], [0, 0, 1, 1], [], []>} : vector<140x64xbf16>, vector<64x128xbf16>, vector<140x128xf32> -> vector<140x128xf32>
    %6 = arith.addf %0, %5 : vector<140x128xf32>
    %c0_7 = arith.constant 0 : index
    %c1 = arith.constant 1 : index
    %c0_8 = arith.constant 0 : index
    %7 = vector.load %arg1[%c0_7, %c1, %c0_8] : memref<1x182x64xbf16, #tpu.memory_space<vmem>>, vector<1x140x64xbf16>
    %8 = vector.shape_cast %7 : vector<1x140x64xbf16> to vector<140x64xbf16>
    %c0_9 = arith.constant 0 : index
    %c1_10 = arith.constant 1 : index
    %c0_11 = arith.constant 0 : index
    %c0_12 = arith.constant 0 : index
    %9 = vector.load %arg2[%c0_9, %c1_10, %c0_11, %c0_12] : memref<3x3x64x128xbf16, #tpu.memory_space<vmem>>, vector<1x1x64x128xbf16>
    %10 = vector.shape_cast %9 : vector<1x1x64x128xbf16> to vector<64x128xbf16>
    %cst_13 = arith.constant dense<0.000000e+00> : vector<140x128xf32>
    %11 = tpu.matmul %8, %10, %cst_13 {dimension_numbers = #tpu.dot_dimension_numbers<[1], [0], [0], [1], [0, 0, 1, 1], [], []>} : vector<140x64xbf16>, vector<64x128xbf16>, vector<140x128xf32> -> vector<140x128xf32>
    %12 = arith.addf %6, %11 : vector<140x128xf32>
    %c0_14 = arith.constant 0 : index
    %c2 = arith.constant 2 : index
    %c0_15 = arith.constant 0 : index
    %13 = vector.load %arg1[%c0_14, %c2, %c0_15] : memref<1x182x64xbf16, #tpu.memory_space<vmem>>, vector<1x140x64xbf16>
    %14 = vector.shape_cast %13 : vector<1x140x64xbf16> to vector<140x64xbf16>
    %c0_16 = arith.constant 0 : index
    %c2_17 = arith.constant 2 : index
    %c0_18 = arith.constant 0 : index
    %c0_19 = arith.constant 0 : index
    %15 = vector.load %arg2[%c0_16, %c2_17, %c0_18, %c0_19] : memref<3x3x64x128xbf16, #tpu.memory_space<vmem>>, vector<1x1x64x128xbf16>
    %16 = vector.shape_cast %15 : vector<1x1x64x128xbf16> to vector<64x128xbf16>
    %cst_20 = arith.constant dense<0.000000e+00> : vector<140x128xf32>
    %17 = tpu.matmul %14, %16, %cst_20 {dimension_numbers = #tpu.dot_dimension_numbers<[1], [0], [0], [1], [0, 0, 1, 1], [], []>} : vector<140x64xbf16>, vector<64x128xbf16>, vector<140x128xf32> -> vector<140x128xf32>
    %18 = arith.addf %12, %17 : vector<140x128xf32>
    %c0_21 = arith.constant 0 : index
    %c14 = arith.constant 14 : index
    %c0_22 = arith.constant 0 : index
    %19 = vector.load %arg1[%c0_21, %c14, %c0_22] : memref<1x182x64xbf16, #tpu.memory_space<vmem>>, vector<1x140x64xbf16>
    %20 = vector.shape_cast %19 : vector<1x140x64xbf16> to vector<140x64xbf16>
    %c1_23 = arith.constant 1 : index
    %c0_24 = arith.constant 0 : index
    %c0_25 = arith.constant 0 : index
    %c0_26 = arith.constant 0 : index
    %21 = vector.load %arg2[%c1_23, %c0_24, %c0_25, %c0_26] : memref<3x3x64x128xbf16, #tpu.memory_space<vmem>>, vector<1x1x64x128xbf16>
    %22 = vector.shape_cast %21 : vector<1x1x64x128xbf16> to vector<64x128xbf16>
    %cst_27 = arith.constant dense<0.000000e+00> : vector<140x128xf32>
    %23 = tpu.matmul %20, %22, %cst_27 {dimension_numbers = #tpu.dot_dimension_numbers<[1], [0], [0], [1], [0, 0, 1, 1], [], []>} : vector<140x64xbf16>, vector<64x128xbf16>, vector<140x128xf32> -> vector<140x128xf32>
    %24 = arith.addf %18, %23 : vector<140x128xf32>
    %c0_28 = arith.constant 0 : index
    %c15 = arith.constant 15 : index
    %c0_29 = arith.constant 0 : index
    %25 = vector.load %arg1[%c0_28, %c15, %c0_29] : memref<1x182x64xbf16, #tpu.memory_space<vmem>>, vector<1x140x64xbf16>
    %26 = vector.shape_cast %25 : vector<1x140x64xbf16> to vector<140x64xbf16>
    %c1_30 = arith.constant 1 : index
    %c1_31 = arith.constant 1 : index
    %c0_32 = arith.constant 0 : index
    %c0_33 = arith.constant 0 : index
    %27 = vector.load %arg2[%c1_30, %c1_31, %c0_32, %c0_33] : memref<3x3x64x128xbf16, #tpu.memory_space<vmem>>, vector<1x1x64x128xbf16>
    %28 = vector.shape_cast %27 : vector<1x1x64x128xbf16> to vector<64x128xbf16>
    %cst_34 = arith.constant dense<0.000000e+00> : vector<140x128xf32>
    %29 = tpu.matmul %26, %28, %cst_34 {dimension_numbers = #tpu.dot_dimension_numbers<[1], [0], [0], [1], [0, 0, 1, 1], [], []>} : vector<140x64xbf16>, vector<64x128xbf16>, vector<140x128xf32> -> vector<140x128xf32>
    %30 = arith.addf %24, %29 : vector<140x128xf32>
    %c0_35 = arith.constant 0 : index
    %c16 = arith.constant 16 : index
    %c0_36 = arith.constant 0 : index
    %31 = vector.load %arg1[%c0_35, %c16, %c0_36] : memref<1x182x64xbf16, #tpu.memory_space<vmem>>, vector<1x140x64xbf16>
    %32 = vector.shape_cast %31 : vector<1x140x64xbf16> to vector<140x64xbf16>
    %c1_37 = arith.constant 1 : index
    %c2_38 = arith.constant 2 : index
    %c0_39 = arith.constant 0 : index
    %c0_40 = arith.constant 0 : index
    %33 = vector.load %arg2[%c1_37, %c2_38, %c0_39, %c0_40] : memref<3x3x64x128xbf16, #tpu.memory_space<vmem>>, vector<1x1x64x128xbf16>
    %34 = vector.shape_cast %33 : vector<1x1x64x128xbf16> to vector<64x128xbf16>
    %cst_41 = arith.constant dense<0.000000e+00> : vector<140x128xf32>
    %35 = tpu.matmul %32, %34, %cst_41 {dimension_numbers = #tpu.dot_dimension_numbers<[1], [0], [0], [1], [0, 0, 1, 1], [], []>} : vector<140x64xbf16>, vector<64x128xbf16>, vector<140x128xf32> -> vector<140x128xf32>
    %36 = arith.addf %30, %35 : vector<140x128xf32>
    %c0_42 = arith.constant 0 : index
    %c28 = arith.constant 28 : index
    %c0_43 = arith.constant 0 : index
    %37 = vector.load %arg1[%c0_42, %c28, %c0_43] : memref<1x182x64xbf16, #tpu.memory_space<vmem>>, vector<1x140x64xbf16>
    %38 = vector.shape_cast %37 : vector<1x140x64xbf16> to vector<140x64xbf16>
    %c2_44 = arith.constant 2 : index
    %c0_45 = arith.constant 0 : index
    %c0_46 = arith.constant 0 : index
    %c0_47 = arith.constant 0 : index
    %39 = vector.load %arg2[%c2_44, %c0_45, %c0_46, %c0_47] : memref<3x3x64x128xbf16, #tpu.memory_space<vmem>>, vector<1x1x64x128xbf16>
    %40 = vector.shape_cast %39 : vector<1x1x64x128xbf16> to vector<64x128xbf16>
    %cst_48 = arith.constant dense<0.000000e+00> : vector<140x128xf32>
    %41 = tpu.matmul %38, %40, %cst_48 {dimension_numbers = #tpu.dot_dimension_numbers<[1], [0], [0], [1], [0, 0, 1, 1], [], []>} : vector<140x64xbf16>, vector<64x128xbf16>, vector<140x128xf32> -> vector<140x128xf32>
    %42 = arith.addf %36, %41 : vector<140x128xf32>
    %c0_49 = arith.constant 0 : index
    %c29 = arith.constant 29 : index
    %c0_50 = arith.constant 0 : index
    %43 = vector.load %arg1[%c0_49, %c29, %c0_50] : memref<1x182x64xbf16, #tpu.memory_space<vmem>>, vector<1x140x64xbf16>
    %44 = vector.shape_cast %43 : vector<1x140x64xbf16> to vector<140x64xbf16>
    %c2_51 = arith.constant 2 : index
    %c1_52 = arith.constant 1 : index
    %c0_53 = arith.constant 0 : index
    %c0_54 = arith.constant 0 : index
    %45 = vector.load %arg2[%c2_51, %c1_52, %c0_53, %c0_54] : memref<3x3x64x128xbf16, #tpu.memory_space<vmem>>, vector<1x1x64x128xbf16>
    %46 = vector.shape_cast %45 : vector<1x1x64x128xbf16> to vector<64x128xbf16>
    %cst_55 = arith.constant dense<0.000000e+00> : vector<140x128xf32>
    %47 = tpu.matmul %44, %46, %cst_55 {dimension_numbers = #tpu.dot_dimension_numbers<[1], [0], [0], [1], [0, 0, 1, 1], [], []>} : vector<140x64xbf16>, vector<64x128xbf16>, vector<140x128xf32> -> vector<140x128xf32>
    %48 = arith.addf %42, %47 : vector<140x128xf32>
    %c0_56 = arith.constant 0 : index
    %c30 = arith.constant 30 : index
    %c0_57 = arith.constant 0 : index
    %49 = vector.load %arg1[%c0_56, %c30, %c0_57] : memref<1x182x64xbf16, #tpu.memory_space<vmem>>, vector<1x140x64xbf16>
    %50 = vector.shape_cast %49 : vector<1x140x64xbf16> to vector<140x64xbf16>
    %c2_58 = arith.constant 2 : index
    %c2_59 = arith.constant 2 : index
    %c0_60 = arith.constant 0 : index
    %c0_61 = arith.constant 0 : index
    %51 = vector.load %arg2[%c2_58, %c2_59, %c0_60, %c0_61] : memref<3x3x64x128xbf16, #tpu.memory_space<vmem>>, vector<1x1x64x128xbf16>
    %52 = vector.shape_cast %51 : vector<1x1x64x128xbf16> to vector<64x128xbf16>
    %cst_62 = arith.constant dense<0.000000e+00> : vector<140x128xf32>
    %53 = tpu.matmul %50, %52, %cst_62 {dimension_numbers = #tpu.dot_dimension_numbers<[1], [0], [0], [1], [0, 0, 1, 1], [], []>} : vector<140x64xbf16>, vector<64x128xbf16>, vector<140x128xf32> -> vector<140x128xf32>
    %54 = arith.addf %48, %53 : vector<140x128xf32>
    %c0_63 = arith.constant 0 : index
    %c0_64 = arith.constant 0 : index
    %c0_65 = arith.constant 0 : index
    %55 = vector.load %arg5[%c0_63, %c0_64, %c0_65] : memref<1x140x128xbf16, #tpu.memory_space<vmem>>, vector<1x140x128xbf16>
    %56 = vector.shape_cast %55 : vector<1x140x128xbf16> to vector<140x128xbf16>
    %57 = arith.extf %56 : vector<140x128xbf16> to vector<140x128xf32>
    %58 = arith.addf %54, %57 : vector<140x128xf32>
    %c0_66 = arith.constant 0 : index
    %c0_67 = arith.constant 0 : index
    %59 = vector.load %arg3[%c0_66, %c0_67] : memref<1x128xf32, #tpu.memory_space<vmem>>, vector<1x128xf32>
    %60 = vector.broadcast %59 : vector<1x128xf32> to vector<140x128xf32>
    %61 = arith.mulf %58, %60 : vector<140x128xf32>
    %c0_68 = arith.constant 0 : index
    %c0_69 = arith.constant 0 : index
    %62 = vector.load %arg4[%c0_68, %c0_69] : memref<1x128xf32, #tpu.memory_space<vmem>>, vector<1x128xf32>
    %63 = vector.broadcast %62 : vector<1x128xf32> to vector<140x128xf32>
    %64 = arith.addf %61, %63 : vector<140x128xf32>
    %cst_70 = arith.constant 0.000000e+00 : f32
    %65 = vector.broadcast %cst_70 : f32 to vector<140x128xf32>
    %66 = arith.maximumf %64, %65 : vector<140x128xf32>
    %67 = arith.truncf %66 : vector<140x128xf32> to vector<140x128xbf16>
    %c0_71 = arith.constant 0 : index
    %c0_72 = arith.constant 0 : index
    %c0_73 = arith.constant 0 : index
    %68 = vector.load %arg6[%c0_71, %c0_72, %c0_73] : memref<1x140x128xbf16, #tpu.memory_space<vmem>>, vector<1x140x128xbf16>
    %69 = vector.shape_cast %68 : vector<1x140x128xbf16> to vector<140x128xbf16>
    %70 = vector.shape_cast %67 : vector<140x128xbf16> to vector<1x140x128xbf16>
    tpu.vector_store %arg6[%c0_71, %c0_72, %c0_73], %70 {strides = array<i32>} : memref<1x140x128xbf16, #tpu.memory_space<vmem>>, vector<1x140x128xbf16>,
    return
  }
  func.func @transform_0(%arg0: i32) -> (i32, i32, i32) {
    %c0_i32 = arith.constant 0 : i32
    %c0_i32_0 = arith.constant 0 : i32
    %c0_i32_1 = arith.constant 0 : i32
    return %arg0, %c0_i32, %c0_i32_0 : i32, i32, i32
  }
  func.func @transform_1(%arg0: i32) -> (i32, i32, i32, i32) {
    %c0_i32 = arith.constant 0 : i32
    %c0_i32_0 = arith.constant 0 : i32
    %c0_i32_1 = arith.constant 0 : i32
    %c0_i32_2 = arith.constant 0 : i32
    %c0_i32_3 = arith.constant 0 : i32
    return %c0_i32, %c0_i32_0, %c0_i32_1, %c0_i32_2 : i32, i32, i32, i32
  }
  func.func @transform_2(%arg0: i32) -> (i32, i32) {
    %c0_i32 = arith.constant 0 : i32
    %c0_i32_0 = arith.constant 0 : i32
    %c0_i32_1 = arith.constant 0 : i32
    return %c0_i32, %c0_i32_0 : i32, i32
  }
  func.func @transform_3(%arg0: i32) -> (i32, i32) {
    %c0_i32 = arith.constant 0 : i32
    %c0_i32_0 = arith.constant 0 : i32
    %c0_i32_1 = arith.constant 0 : i32
    return %c0_i32, %c0_i32_0 : i32, i32
  }
  func.func @transform_4(%arg0: i32) -> (i32, i32, i32) {
    %c0_i32 = arith.constant 0 : i32
    %c0_i32_0 = arith.constant 0 : i32
    %c0_i32_1 = arith.constant 0 : i32
    return %arg0, %c0_i32, %c0_i32_0 : i32, i32, i32
  }
  func.func @transform_5(%arg0: i32) -> (i32, i32, i32) {
    %c0_i32 = arith.constant 0 : i32
    %c0_i32_0 = arith.constant 0 : i32
    %c0_i32_1 = arith.constant 0 : i32
    return %arg0, %c0_i32, %c0_i32_0 : i32, i32, i32
  }
}

</mosaic_0001>

<llo_original>
// kernel: tpu_custom_call.1
$region0: #{tpu_custom_call.1}
  #allocation0 [shape = 'u32[]', space=smem, size = 0x4, offset = 0x4, fixed_abs, tag = 'smem constant byte address 0x4 - core index']
  #allocation1 [shape = 'u32[144,128]{1,0:T(1,128)}', space=vmem, size = 0x12000, scoped, tag = 'internal scratch']
  %s0 = inlined_call_operand.vmem [shape: bf16[1,182,64], index: 0, kind: input, shape index: {}]
  %s1 = inlined_call_operand.hbm [shape: bf16[3,3,64,128], index: 1, kind: input, shape index: {}]
  %s2 = inlined_call_operand.vmem [shape: f32[1,128], index: 2, kind: input, shape index: {}]
  %s3 = inlined_call_operand.vmem [shape: f32[1,128], index: 3, kind: input, shape index: {}]
  %s4 = inlined_call_operand.vmem [shape: bf16[1,140,128], index: 4, kind: input, shape index: {}]
  %s5 = inlined_call_operand.hbm [shape: bf16[1,140,128], index: 5, kind: output, shape index: {}]
  %s6 = sld [smem:[#allocation0]]
  $region34: #{tpu_custom_call.1} parent=0
    _
  %s8 = ssub.s32 1, %s6
  %s9 = scalar_select 0, %s8, %s6
  $region1: #{tpu_custom_call.1} parent=0
    #allocation2 [shape = 'u8[147456]{0}', space=vmem, size = 0x24000, scoped, tag = 'input window, operand 1, single buffered']
    #allocation3 [shape = 's32[1]{0}', space=sflag, size = 0x4, scoped, tag = 'scoped memory for tpu_custom_call.1']
    #allocation4 [shape = 's32[1]{0}', space=sflag, size = 0x4, scoped, tag = 'scoped memory for tpu_custom_call.1']
    #allocation5 [shape = 'u8[36864]{0}', space=vmem, size = 0x9000, scoped, tag = 'output window, operand 0, single buffered']
    %10 = vsyncpa [#allocation3], 0
    %11 = vsyncpa [#allocation4], 0
    // Predicated region
    $region2: #{tpu_custom_call.1} parent=1 // pred_check
      _
    $region3: #{tpu_custom_call.1} parent=1 // pred_check_branch
      %13 = sbr.rel (0) target = $region5
    $region4: #{tpu_custom_call.1} parent=1 // pred_region
      _
    $region5: #{tpu_custom_call.1} parent=1 // pred_fallthru
      _
    // Predicated region
    $region6: #{tpu_custom_call.1} parent=1 // pred_check
      _
    $region7: #{tpu_custom_call.1} parent=1 // pred_check_branch
      %15 = sbr.rel (0) target = $region9
    $region8: #{tpu_custom_call.1} parent=1 // pred_region
      %s17 = ssub.s32 4608, 4608
      %18 = vsyncadd [#allocation3], %s17
      %s19 = sshll.u32 [#allocation2], 4
      %s20 = int_to_ptr.vmem [resolvable:$true] %s19
      %25 = dma.hbm_to_vmem [thread:$0]  %s1, 4608, %s20, [#allocation3], 64, 64, 4
    $region9: #{tpu_custom_call.1} parent=1 // pred_fallthru
      _
    // Predicated region
    $region10: #{tpu_custom_call.1} parent=1 // pred_check
      _
    $region11: #{tpu_custom_call.1} parent=1 // pred_check_branch
      %27 = sbr.rel (0) target = $region13
    $region12: #{tpu_custom_call.1} parent=1 // pred_region
      _
    $region13: #{tpu_custom_call.1} parent=1 // pred_fallthru
      _
    // Predicated region
    $region14: #{tpu_custom_call.1} parent=1 // pred_check
      _
    $region15: #{tpu_custom_call.1} parent=1 // pred_check_branch
      %29 = sbr.rel (0) target = $region17
    $region16: #{tpu_custom_call.1} parent=1 // pred_region
      _
    $region17: #{tpu_custom_call.1} parent=1 // pred_fallthru
      _
    // Predicated region
    $region18: #{tpu_custom_call.1} parent=1 // pred_check
      _
    $region19: #{tpu_custom_call.1} parent=1 // pred_check_branch
      %31 = sbr.rel (0) target = $region21
    $region20: #{tpu_custom_call.1} parent=1 // pred_region
      _
    $region21: #{tpu_custom_call.1} parent=1 // pred_fallthru
      _
    // Predicated region
    $region22: #{tpu_custom_call.1} parent=1 // pred_check
      _
    $region23: #{tpu_custom_call.1} parent=1 // pred_check_branch
      %33 = sbr.rel (0) target = $region25
    $region24: #{tpu_custom_call.1} parent=1 // pred_region
      %34 = dma.done [#allocation3], 4608
    $region25: #{tpu_custom_call.1} parent=1 // pred_fallthru
      _
    %v36 = vld [vmem:[%s0] sm:$0xf]
    %v37 = vld [vmem:[%s0 + $0x4] sm:$0xf]
    %v38 = vld [vmem:[%s0 + $0x8] sm:$0xf]
    %v39 = vld [vmem:[%s0 + $0xc] sm:$0xf]
    %v40 = vld [vmem:[%s0 + $0x10] sm:$0xf]
    %v41 = vld [vmem:[%s0 + $0x14] sm:$0xf]
    %v42 = vld [vmem:[%s0 + $0x18] sm:$0xf]
    %v43 = vld [vmem:[%s0 + $0x1c] sm:$0xf]
    %v44 = vld [vmem:[%s0 + $0x20] sm:$0xf]
    %v45 = vld [vmem:[%s0 + $0x24] sm:$0xf]
    %v46 = vld [vmem:[%s0 + $0x28] sm:$0xf]
    %v47 = vld [vmem:[%s0 + $0x2c] sm:$0xf]
    %v48 = vld [vmem:[%s0 + $0x30] sm:$0xf]
    %v49 = vld [vmem:[%s0 + $0x34] sm:$0xf]
    %v50 = vld [vmem:[%s0 + $0x38] sm:$0xf]
    %v51 = vld [vmem:[%s0 + $0x3c] sm:$0xf]
    %v52 = vld [vmem:[%s0 + $0x40] sm:$0xf]
    %v53 = vld [vmem:[%s0 + $0x44] sm:$0x3]
    %v54 = vld [vmem:[#allocation2] sm:$0xf]
    %v55 = vld [vmem:[#allocation2 + $0x4] sm:$0xf]
    %v56 = vld [vmem:[#allocation2 + $0x8] sm:$0xf]
    %v57 = vld [vmem:[#allocation2 + $0xc] sm:$0xf]
    %v58 = vld [vmem:[#allocation2 + $0x10] sm:$0xf]
    %v59 = vld [vmem:[#allocation2 + $0x14] sm:$0xf]
    %v60 = vld [vmem:[#allocation2 + $0x18] sm:$0xf]
    %v61 = vld [vmem:[#allocation2 + $0x1c] sm:$0xf]
    %v62 = vld [vmem:[%s0 + $0x44] sm:$0x7]
    %s63 = scalar_lea.vmem [#allocation2], 32
    %v64 = vld [vmem:[%s63] sm:$0xf]
    %v65 = vld [vmem:[%s63 + $0x4] sm:$0xf]
    %v66 = vld [vmem:[%s63 + $0x8] sm:$0xf]
    %v67 = vld [vmem:[%s63 + $0xc] sm:$0xf]
    %v68 = vld [vmem:[%s63 + $0x10] sm:$0xf]
    %v69 = vld [vmem:[%s63 + $0x14] sm:$0xf]
    %v70 = vld [vmem:[%s63 + $0x18] sm:$0xf]
    %v71 = vld [vmem:[%s63 + $0x1c] sm:$0xf]
    %v90 = vunpack.c.l.b16 %v36
    %v91 = vunpack.c.l.b16 %v37
    %v92 = vunpack.c.l.b16 %v38
    %v93 = vunpack.c.l.b16 %v39
    %v94 = vunpack.c.l.b16 %v40
    %v95 = vunpack.c.l.b16 %v41
    %v96 = vunpack.c.l.b16 %v42
    %v97 = vunpack.c.l.b16 %v43
    %v98 = vunpack.c.l.b16 %v44
    %v99 = vunpack.c.l.b16 %v45
    %v100 = vunpack.c.l.b16 %v46
    %v101 = vunpack.c.l.b16 %v47
    %v102 = vunpack.c.l.b16 %v48
    %v103 = vunpack.c.l.b16 %v49
    %v104 = vunpack.c.l.b16 %v50
    %v105 = vunpack.c.l.b16 %v51
    %v106 = vunpack.c.l.b16 %v52
    %v107 = vunpack.c.l.b16 %v62
    %v108 = vpack.c.b16 %v91, %v90
    %v109 = vpack.c.b16 %v93, %v92
    %v110 = vpack.c.b16 %v95, %v94
    %v111 = vpack.c.b16 %v97, %v96
    %v112 = vpack.c.b16 %v99, %v98
    %v113 = vpack.c.b16 %v101, %v100
    %v114 = vpack.c.b16 %v103, %v102
    %v115 = vpack.c.b16 %v105, %v104
    %v116 = vpack.c.b16 %v107, %v106
    %vm117 = vsmask.f32 7424
    %v119 = vshrl.u32 %v108, 16
    %v121 = vshll.u32 %v108, 16
    %v123 = vrot.slane %v121, 1
    %v124 = vor.u32 %v119, %v123
    %v126 = vshll.u32 %v109, 16
    %v128 = vrot.slane %v126, 1
    %v129 = vsel %vm117, %v124, %v128
    %v130 = vshrl.u32 %v109, 16
    %v132 = vor.u32 %v130, %v128
    %v134 = vshll.u32 %v110, 16
    %v136 = vrot.slane %v134, 1
    %v137 = vsel %vm117, %v132, %v136
    %v138 = vshrl.u32 %v110, 16
    %v140 = vor.u32 %v138, %v136
    %v142 = vshll.u32 %v111, 16
    %v144 = vrot.slane %v142, 1
    %v145 = vsel %vm117, %v140, %v144
    %v146 = vshrl.u32 %v111, 16
    %v148 = vor.u32 %v146, %v144
    %v150 = vshll.u32 %v112, 16
    %v152 = vrot.slane %v150, 1
    %v153 = vsel %vm117, %v148, %v152
    %v154 = vshrl.u32 %v112, 16
    %v156 = vor.u32 %v154, %v152
    %v158 = vshll.u32 %v113, 16
    %v160 = vrot.slane %v158, 1
    %v161 = vsel %vm117, %v156, %v160
    %v162 = vshrl.u32 %v113, 16
    %v164 = vor.u32 %v162, %v160
    %v166 = vshll.u32 %v114, 16
    %v168 = vrot.slane %v166, 1
    %v169 = vsel %vm117, %v164, %v168
    %v170 = vshrl.u32 %v114, 16
    %v172 = vor.u32 %v170, %v168
    %v174 = vshll.u32 %v115, 16
    %v176 = vrot.slane %v174, 1
    %v177 = vsel %vm117, %v172, %v176
    %v178 = vshrl.u32 %v115, 16
    %v180 = vor.u32 %v178, %v176
    %v182 = vshll.u32 %v116, 16
    %v184 = vrot.slane %v182, 1
    %v185 = vsel %vm117, %v180, %v184
    %v186 = vshrl.u32 %v116, 16
    %v188 = vor.u32 %v186, %v184
    %v197 = vunpack.c.l.b16 %v64
    %v198 = vunpack.c.l.b16 %v65
    %v199 = vunpack.c.l.b16 %v66
    %v200 = vunpack.c.l.b16 %v67
    %v201 = vunpack.c.l.b16 %v68
    %v202 = vunpack.c.l.b16 %v69
    %v203 = vunpack.c.l.b16 %v70
    %v204 = vunpack.c.l.b16 %v71
    %v205 = vpack.c.b16 %v198, %v197
    %v206 = vpack.c.b16 %v200, %v199
    %v207 = vpack.c.b16 %v202, %v201
    %v208 = vpack.c.b16 %v204, %v203
    %vm213 = vcmask 523264
    %v215 = vsel %vm213, %v129, 0
    %v218 = vsel %vm213, %v137, 0
    %v221 = vsel %vm213, %v145, 0
    %v224 = vsel %vm213, %v153, 0
    %v227 = vsel %vm213, %v161, 0
    %v230 = vsel %vm213, %v169, 0
    %v233 = vsel %vm213, %v177, 0
    %v236 = vsel %vm213, %v185, 0
    %v239 = vsel %vm213, %v188, 0
    %241 = vmatprep.subr.bf16.mxu0 0
    %242 = vmatpush1.bf16.msra.mxu0 0
    %243 = vmatprep.subr.bf16.mxu0 0
    %244 = vmatpush1.bf16.msra.mxu0 0
    %245 = vmatprep.subr.bf16.mxu0 0
    %246 = vmatpush1.bf16.msra.mxu0 0
    %247 = vmatprep.subr.bf16.mxu0 0
    %248 = vmatpush1.bf16.msra.mxu0 0
    %249 = vmatprep.subr.bf16.mxu0 0
    %250 = vmatpush1.bf16.msra.mxu0 %v208
    %251 = vmatprep.subr.bf16.mxu0 0
    %252 = vmatpush1.bf16.msra.mxu0 %v207
    %253 = vmatprep.subr.bf16.mxu0 0
    %254 = vmatpush1.bf16.msra.mxu0 %v206
    %255 = vmatprep.subr.bf16.mxu0 0
    %256 = vmatpush1.bf16.msra.mxu0 %v205
    %257 = vmatprep.subr.bf16.mxu0 0
    %258 = vmatpush2.bf16.msra.mxu0 0
    %259 = vmatprep.subr.bf16.mxu0 0
    %260 = vmatpush2.bf16.msra.mxu0 0
    %261 = vmatprep.subr.bf16.mxu0 0
    %262 = vmatpush2.bf16.msra.mxu0 0
    %263 = vmatprep.subr.bf16.mxu0 0
    %264 = vmatpush2.bf16.msra.mxu0 0
    %265 = vmatprep.subr.bf16.mxu0 0
    %266 = vmatpush2.bf16.msra.mxu0 0
    %267 = vmatprep.subr.bf16.mxu0 0
    %268 = vmatpush2.bf16.msra.mxu0 0
    %269 = vmatprep.subr.bf16.mxu0 0
    %270 = vmatpush2.bf16.msra.mxu0 0
    %271 = vmatprep.subr.bf16.mxu0 0
    %272 = vmatpush2.bf16.msra.mxu0 0
    %273 = vmatprep.mubr.bf16.mxu0 0
    %274 = vmatmul.mubr.bf16.gmra.mxu0 %v215
    %v275 = vpop.f32.mrf.mxu0
    %v276 = vadd.f32 0.0, %v275
    %v277 = vpop.f32.mrf.mxu0
    %v278 = vpop.f32.mrf.mxu0
    %v279 = vadd.f32 0.0, %v278
    %v280 = vpop.f32.mrf.mxu0
    %281 = vmatprep.mubr.bf16.mxu0 0
    %282 = vmatmul.mubr.bf16.gmra.mxu0 %v218
    %v283 = vpop.f32.mrf.mxu0
    %v284 = vadd.f32 0.0, %v283
    %v285 = vpop.f32.mrf.mxu0
    %v286 = vpop.f32.mrf.mxu0
    %v287 = vadd.f32 0.0, %v286
    %v288 = vpop.f32.mrf.mxu0
    %289 = vmatprep.mubr.bf16.mxu0 0
    %290 = vmatmul.mubr.bf16.gmra.mxu0 %v221
    %v291 = vpop.f32.mrf.mxu0
    %v292 = vadd.f32 0.0, %v291
    %v293 = vpop.f32.mrf.mxu0
    %v294 = vpop.f32.mrf.mxu0
    %v295 = vadd.f32 0.0, %v294
    %v296 = vpop.f32.mrf.mxu0
    %297 = vmatprep.mubr.bf16.mxu0 0
    %298 = vmatmul.mubr.bf16.gmra.mxu0 %v224
    %v299 = vpop.f32.mrf.mxu0
    %v300 = vadd.f32 0.0, %v299
    %v301 = vpop.f32.mrf.mxu0
    %v302 = vpop.f32.mrf.mxu0
    %v303 = vadd.f32 0.0, %v302
    %v304 = vpop.f32.mrf.mxu0
    %305 = vmatprep.mubr.bf16.mxu0 0
    %306 = vmatmul.mubr.bf16.gmra.mxu0 %v227
    %v307 = vpop.f32.mrf.mxu0
    %v308 = vadd.f32 0.0, %v307
    %v309 = vpop.f32.mrf.mxu0
    %v310 = vpop.f32.mrf.mxu0
    %v311 = vadd.f32 0.0, %v310
    %v312 = vpop.f32.mrf.mxu0
    %313 = vmatprep.mubr.bf16.mxu0 0
    %314 = vmatmul.mubr.bf16.gmra.mxu0 %v230
    %v315 = vpop.f32.mrf.mxu0
    %v316 = vadd.f32 0.0, %v315
    %v317 = vpop.f32.mrf.mxu0
    %v318 = vpop.f32.mrf.mxu0
    %v319 = vadd.f32 0.0, %v318
    %v320 = vpop.f32.mrf.mxu0
    %321 = vmatprep.mubr.bf16.mxu0 0
    %322 = vmatmul.mubr.bf16.gmra.mxu0 %v233
    %v323 = vpop.f32.mrf.mxu0
    %v324 = vadd.f32 0.0, %v323
    %v325 = vpop.f32.mrf.mxu0
    %v326 = vpop.f32.mrf.mxu0
    %v327 = vadd.f32 0.0, %v326
    %v328 = vpop.f32.mrf.mxu0
    %329 = vmatprep.mubr.bf16.mxu0 0
    %330 = vmatmul.mubr.bf16.gmra.mxu0 %v236
    %v331 = vpop.f32.mrf.mxu0
    %v332 = vadd.f32 0.0, %v331
    %v333 = vpop.f32.mrf.mxu0
    %v334 = vpop.f32.mrf.mxu0
    %v335 = vadd.f32 0.0, %v334
    %v336 = vpop.f32.mrf.mxu0
    %337 = vmatprep.mubr.bf16.mxu0 0
    %338 = vmatmul.mubr.bf16.gmra.mxu0 %v239
    %v339 = vpop.f32.mrf.mxu0
    %v340 = vadd.f32 0.0, %v339
    %v341 = vpop.f32.mrf.mxu0
    %v342 = vpop.f32.mrf.mxu0
    %v343 = vadd.f32 0.0, %v342
    %v344 = vpop.f32.mrf.mxu0
    %345 = vdwg.mxu0
    %v347 = vunpack.c.l.b16 %v53
    %v348 = vpack.c.b16 %v347, %v106
    %v357 = vunpack.c.l.b16 %v54
    %v358 = vunpack.c.l.b16 %v55
    %v359 = vunpack.c.l.b16 %v56
    %v360 = vunpack.c.l.b16 %v57
    %v361 = vunpack.c.l.b16 %v58
    %v362 = vunpack.c.l.b16 %v59
    %v363 = vunpack.c.l.b16 %v60
    %v364 = vunpack.c.l.b16 %v61
    %v365 = vpack.c.b16 %v358, %v357
    %v366 = vpack.c.b16 %v360, %v359
    %v367 = vpack.c.b16 %v362, %v361
    %v368 = vpack.c.b16 %v364, %v363
    %v373 = vsel %vm213, %v108, 0
    %v375 = vsel %vm213, %v109, 0
    %v377 = vsel %vm213, %v110, 0
    %v379 = vsel %vm213, %v111, 0
    %v381 = vsel %vm213, %v112, 0
    %v383 = vsel %vm213, %v113, 0
    %v385 = vsel %vm213, %v114, 0
    %v387 = vsel %vm213, %v115, 0
    %v390 = vsel %vm213, %v348, 0
    %392 = vmatprep.subr.bf16.mxu0 0
    %393 = vmatpush1.bf16.msra.mxu0 0
    %394 = vmatprep.subr.bf16.mxu0 0
    %395 = vmatpush1.bf16.msra.mxu0 0
    %396 = vmatprep.subr.bf16.mxu0 0
    %397 = vmatpush1.bf16.msra.mxu0 0
    %398 = vmatprep.subr.bf16.mxu0 0
    %399 = vmatpush1.bf16.msra.mxu0 0
    %400 = vmatprep.subr.bf16.mxu0 0
    %401 = vmatpush1.bf16.msra.mxu0 %v368
    %402 = vmatprep.subr.bf16.mxu0 0
    %403 = vmatpush1.bf16.msra.mxu0 %v367
    %404 = vmatprep.subr.bf16.mxu0 0
    %405 = vmatpush1.bf16.msra.mxu0 %v366
    %406 = vmatprep.subr.bf16.mxu0 0
    %407 = vmatpush1.bf16.msra.mxu0 %v365
    %408 = vmatprep.subr.bf16.mxu0 0
    %409 = vmatpush2.bf16.msra.mxu0 0
    %410 = vmatprep.subr.bf16.mxu0 0
    %411 = vmatpush2.bf16.msra.mxu0 0
    %412 = vmatprep.subr.bf16.mxu0 0
    %413 = vmatpush2.bf16.msra.mxu0 0
    %414 = vmatprep.subr.bf16.mxu0 0
    %415 = vmatpush2.bf16.msra.mxu0 0
    %416 = vmatprep.subr.bf16.mxu0 0
    %417 = vmatpush2.bf16.msra.mxu0 0
    %418 = vmatprep.subr.bf16.mxu0 0
    %419 = vmatpush2.bf16.msra.mxu0 0
    %420 = vmatprep.subr.bf16.mxu0 0
    %421 = vmatpush2.bf16.msra.mxu0 0
    %422 = vmatprep.subr.bf16.mxu0 0
    %423 = vmatpush2.bf16.msra.mxu0 0
    %424 = vmatprep.mubr.bf16.mxu0 0
    %425 = vmatmul.mubr.bf16.gmra.mxu0 %v373
    %v426 = vpop.f32.mrf.mxu0
    %v427 = vadd.f32 %v276, %v426
    %v428 = vpop.f32.mrf.mxu0
    %v429 = vpop.f32.mrf.mxu0
    %v430 = vadd.f32 %v279, %v429
    %v431 = vpop.f32.mrf.mxu0
    %432 = vmatprep.mubr.bf16.mxu0 0
    %433 = vmatmul.mubr.bf16.gmra.mxu0 %v375
    %v434 = vpop.f32.mrf.mxu0
    %v435 = vadd.f32 %v284, %v434
    %v436 = vpop.f32.mrf.mxu0
    %v437 = vpop.f32.mrf.mxu0
    %v438 = vadd.f32 %v287, %v437
    %v439 = vpop.f32.mrf.mxu0
    %440 = vmatprep.mubr.bf16.mxu0 0
    %441 = vmatmul.mubr.bf16.gmra.mxu0 %v377
    %v442 = vpop.f32.mrf.mxu0
    %v443 = vadd.f32 %v292, %v442
    %v444 = vpop.f32.mrf.mxu0
    %v445 = vpop.f32.mrf.mxu0
    %v446 = vadd.f32 %v295, %v445
    %v447 = vpop.f32.mrf.mxu0
    %448 = vmatprep.mubr.bf16.mxu0 0
    %449 = vmatmul.mubr.bf16.gmra.mxu0 %v379
    %v450 = vpop.f32.mrf.mxu0
    %v451 = vadd.f32 %v300, %v450
    %v452 = vpop.f32.mrf.mxu0
    %v453 = vpop.f32.mrf.mxu0
    %v454 = vadd.f32 %v303, %v453
    %v455 = vpop.f32.mrf.mxu0
    %456 = vmatprep.mubr.bf16.mxu0 0
    %457 = vmatmul.mubr.bf16.gmra.mxu0 %v381
    %v458 = vpop.f32.mrf.mxu0
    %v459 = vadd.f32 %v308, %v458
    %v460 = vpop.f32.mrf.mxu0
    %v461 = vpop.f32.mrf.mxu0
    %v462 = vadd.f32 %v311, %v461
    %v463 = vpop.f32.mrf.mxu0
    %464 = vmatprep.mubr.bf16.mxu0 0
    %465 = vmatmul.mubr.bf16.gmra.mxu0 %v383
    %v466 = vpop.f32.mrf.mxu0
    %v467 = vadd.f32 %v316, %v466
    %v468 = vpop.f32.mrf.mxu0
    %v469 = vpop.f32.mrf.mxu0
    %v470 = vadd.f32 %v319, %v469
    %v471 = vpop.f32.mrf.mxu0
    %472 = vmatprep.mubr.bf16.mxu0 0
    %473 = vmatmul.mubr.bf16.gmra.mxu0 %v385
    %v474 = vpop.f32.mrf.mxu0
    %v475 = vadd.f32 %v324, %v474
    %v476 = vpop.f32.mrf.mxu0
    %v477 = vpop.f32.mrf.mxu0
    %v478 = vadd.f32 %v327, %v477
    %v479 = vpop.f32.mrf.mxu0
    %480 = vmatprep.mubr.bf16.mxu0 0
    %481 = vmatmul.mubr.bf16.gmra.mxu0 %v387
    %v482 = vpop.f32.mrf.mxu0
    %v483 = vadd.f32 %v332, %v482
    %v484 = vpop.f32.mrf.mxu0
    %v485 = vpop.f32.mrf.mxu0
    %v486 = vadd.f32 %v335, %v485
    %v487 = vpop.f32.mrf.mxu0
    %488 = vmatprep.mubr.bf16.mxu0 0
    %489 = vmatmul.mubr.bf16.gmra.mxu0 %v390
    %v490 = vpop.f32.mrf.mxu0
    %v491 = vadd.f32 %v340, %v490
    %v492 = vpop.f32.mrf.mxu0
    %v493 = vpop.f32.mrf.mxu0
    %v494 = vadd.f32 %v343, %v493
    %v495 = vpop.f32.mrf.mxu0
    %496 = vdwg.mxu0
    %v497 = vld [vmem:[%s0] sm:$0xe]
    %s498 = scalar_lea.vmem [#allocation2], 64
    %v499 = vld [vmem:[%s498] sm:$0xf]
    %v500 = vld [vmem:[%s498 + $0x4] sm:$0xf]
    %v501 = vld [vmem:[%s498 + $0x8] sm:$0xf]
    %v502 = vld [vmem:[%s498 + $0xc] sm:$0xf]
    %v503 = vld [vmem:[%s498 + $0x10] sm:$0xf]
    %v504 = vld [vmem:[%s498 + $0x14] sm:$0xf]
    %v505 = vld [vmem:[%s498 + $0x18] sm:$0xf]
    %v506 = vld [vmem:[%s498 + $0x1c] sm:$0xf]
    %v508 = vunpack.c.l.b16 %v497
    %v509 = vpack.c.b16 %v91, %v508
    %vm510 = vcmask 1046528
    %v511 = vrot.slane %v509, 1
    %v512 = vrot.slane %v109, 1
    %v513 = vsel %vm510, %v511, %v512
    %v514 = vrot.slane %v110, 1
    %v515 = vsel %vm510, %v512, %v514
    %v516 = vrot.slane %v111, 1
    %v517 = vsel %vm510, %v514, %v516
    %v518 = vrot.slane %v112, 1
    %v519 = vsel %vm510, %v516, %v518
    %v520 = vrot.slane %v113, 1
    %v521 = vsel %vm510, %v518, %v520
    %v522 = vrot.slane %v114, 1
    %v523 = vsel %vm510, %v520, %v522
    %v524 = vrot.slane %v115, 1
    %v525 = vsel %vm510, %v522, %v524
    %v526 = vrot.slane %v116, 1
    %v527 = vsel %vm510, %v524, %v526
    %v536 = vunpack.c.l.b16 %v499
    %v537 = vunpack.c.l.b16 %v500
    %v538 = vunpack.c.l.b16 %v501
    %v539 = vunpack.c.l.b16 %v502
    %v540 = vunpack.c.l.b16 %v503
    %v541 = vunpack.c.l.b16 %v504
    %v542 = vunpack.c.l.b16 %v505
    %v543 = vunpack.c.l.b16 %v506
    %v544 = vpack.c.b16 %v537, %v536
    %v545 = vpack.c.b16 %v539, %v538
    %v546 = vpack.c.b16 %v541, %v540
    %v547 = vpack.c.b16 %v543, %v542
    %v553 = vsel %vm213, %v513, 0
    %v556 = vsel %vm213, %v515, 0
    %v559 = vsel %vm213, %v517, 0
    %v562 = vsel %vm213, %v519, 0
    %v565 = vsel %vm213, %v521, 0
    %v568 = vsel %vm213, %v523, 0
    %v571 = vsel %vm213, %v525, 0
    %v574 = vsel %vm213, %v527, 0
    %v577 = vsel %vm213, %v526, 0
    %579 = vmatprep.subr.bf16.mxu0 0
    %580 = vmatpush1.bf16.msra.mxu0 0
    %581 = vmatprep.subr.bf16.mxu0 0
    %582 = vmatpush1.bf16.msra.mxu0 0
    %583 = vmatprep.subr.bf16.mxu0 0
    %584 = vmatpush1.bf16.msra.mxu0 0
    %585 = vmatprep.subr.bf16.mxu0 0
    %586 = vmatpush1.bf16.msra.mxu0 0
    %587 = vmatprep.subr.bf16.mxu0 0
    %588 = vmatpush1.bf16.msra.mxu0 %v547
    %589 = vmatprep.subr.bf16.mxu0 0
    %590 = vmatpush1.bf16.msra.mxu0 %v546
    %591 = vmatprep.subr.bf16.mxu0 0
    %592 = vmatpush1.bf16.msra.mxu0 %v545
    %593 = vmatprep.subr.bf16.mxu0 0
    %594 = vmatpush1.bf16.msra.mxu0 %v544
    %595 = vmatprep.subr.bf16.mxu0 0
    %596 = vmatpush2.bf16.msra.mxu0 0
    %597 = vmatprep.subr.bf16.mxu0 0
    %598 = vmatpush2.bf16.msra.mxu0 0
    %599 = vmatprep.subr.bf16.mxu0 0
    %600 = vmatpush2.bf16.msra.mxu0 0
    %601 = vmatprep.subr.bf16.mxu0 0
    %602 = vmatpush2.bf16.msra.mxu0 0
    %603 = vmatprep.subr.bf16.mxu0 0
    %604 = vmatpush2.bf16.msra.mxu0 0
    %605 = vmatprep.subr.bf16.mxu0 0
    %606 = vmatpush2.bf16.msra.mxu0 0
    %607 = vmatprep.subr.bf16.mxu0 0
    %608 = vmatpush2.bf16.msra.mxu0 0
    %609 = vmatprep.subr.bf16.mxu0 0
    %610 = vmatpush2.bf16.msra.mxu0 0
    %611 = vmatprep.mubr.bf16.mxu0 0
    %612 = vmatmul.mubr.bf16.gmra.mxu0 %v553
    %v613 = vpop.f32.mrf.mxu0
    %v614 = vadd.f32 0.0, %v613
    %v615 = vpop.f32.mrf.mxu0
    %v616 = vpop.f32.mrf.mxu0
    %v617 = vadd.f32 0.0, %v616
    %v618 = vpop.f32.mrf.mxu0
    %619 = vmatprep.mubr.bf16.mxu0 0
    %620 = vmatmul.mubr.bf16.gmra.mxu0 %v556
    %v621 = vpop.f32.mrf.mxu0
    %v622 = vadd.f32 0.0, %v621
    %v623 = vpop.f32.mrf.mxu0
    %v624 = vpop.f32.mrf.mxu0
    %v625 = vadd.f32 0.0, %v624
    %v626 = vpop.f32.mrf.mxu0
    %627 = vmatprep.mubr.bf16.mxu0 0
    %628 = vmatmul.mubr.bf16.gmra.mxu0 %v559
    %v629 = vpop.f32.mrf.mxu0
    %v630 = vadd.f32 0.0, %v629
    %v631 = vpop.f32.mrf.mxu0
    %v632 = vpop.f32.mrf.mxu0
    %v633 = vadd.f32 0.0, %v632
    %v634 = vpop.f32.mrf.mxu0
    %635 = vmatprep.mubr.bf16.mxu0 0
    %636 = vmatmul.mubr.bf16.gmra.mxu0 %v562
    %v637 = vpop.f32.mrf.mxu0
    %v638 = vadd.f32 0.0, %v637
    %v639 = vpop.f32.mrf.mxu0
    %v640 = vpop.f32.mrf.mxu0
    %v641 = vadd.f32 0.0, %v640
    %v642 = vpop.f32.mrf.mxu0
    %643 = vmatprep.mubr.bf16.mxu0 0
    %644 = vmatmul.mubr.bf16.gmra.mxu0 %v565
    %v645 = vpop.f32.mrf.mxu0
    %v646 = vadd.f32 0.0, %v645
    %v647 = vpop.f32.mrf.mxu0
    %v648 = vpop.f32.mrf.mxu0
    %v649 = vadd.f32 0.0, %v648
    %v650 = vpop.f32.mrf.mxu0
    %651 = vmatprep.mubr.bf16.mxu0 0
    %652 = vmatmul.mubr.bf16.gmra.mxu0 %v568
    %v653 = vpop.f32.mrf.mxu0
    %v654 = vadd.f32 0.0, %v653
    %v655 = vpop.f32.mrf.mxu0
    %v656 = vpop.f32.mrf.mxu0
    %v657 = vadd.f32 0.0, %v656
    %v658 = vpop.f32.mrf.mxu0
    %659 = vmatprep.mubr.bf16.mxu0 0
    %660 = vmatmul.mubr.bf16.gmra.mxu0 %v571
    %v661 = vpop.f32.mrf.mxu0
    %v662 = vadd.f32 0.0, %v661
    %v663 = vpop.f32.mrf.mxu0
    %v664 = vpop.f32.mrf.mxu0
    %v665 = vadd.f32 0.0, %v664
    %v666 = vpop.f32.mrf.mxu0
    %667 = vmatprep.mubr.bf16.mxu0 0
    %668 = vmatmul.mubr.bf16.gmra.mxu0 %v574
    %v669 = vpop.f32.mrf.mxu0
    %v670 = vadd.f32 0.0, %v669
    %v671 = vpop.f32.mrf.mxu0
    %v672 = vpop.f32.mrf.mxu0
    %v673 = vadd.f32 0.0, %v672
    %v674 = vpop.f32.mrf.mxu0
    %675 = vmatprep.mubr.bf16.mxu0 0
    %676 = vmatmul.mubr.bf16.gmra.mxu0 %v577
    %v677 = vpop.f32.mrf.mxu0
    %v678 = vadd.f32 0.0, %v677
    %v679 = vpop.f32.mrf.mxu0
    %v680 = vpop.f32.mrf.mxu0
    %v681 = vadd.f32 0.0, %v680
    %v682 = vpop.f32.mrf.mxu0
    %683 = vdwg.mxu0
    %v684 = vadd.f32 %v427, %v614
    %v685 = vadd.f32 %v430, %v617
    %v686 = vadd.f32 %v435, %v622
    %v687 = vadd.f32 %v438, %v625
    %v688 = vadd.f32 %v443, %v630
    %v689 = vadd.f32 %v446, %v633
    %v690 = vadd.f32 %v451, %v638
    %v691 = vadd.f32 %v454, %v641
    %v692 = vadd.f32 %v459, %v646
    %v693 = vadd.f32 %v462, %v649
    %v694 = vadd.f32 %v467, %v654
    %v695 = vadd.f32 %v470, %v657
    %v696 = vadd.f32 %v475, %v662
    %v697 = vadd.f32 %v478, %v665
    %v698 = vadd.f32 %v483, %v670
    %v699 = vadd.f32 %v486, %v673
    %v700 = vadd.f32 %v491, %v678
    %v701 = vadd.f32 %v494, %v681
    %v702 = vld [vmem:[%s0 + $0x4] sm:$0x8]
    %v703 = vld [vmem:[%s0 + $0x8] sm:$0xf]
    %v704 = vld [vmem:[%s0 + $0xc] sm:$0xf]
    %v705 = vld [vmem:[%s0 + $0x10] sm:$0xf]
    %v706 = vld [vmem:[%s0 + $0x14] sm:$0xf]
    %v707 = vld [vmem:[%s0 + $0x18] sm:$0xf]
    %v708 = vld [vmem:[%s0 + $0x1c] sm:$0xf]
    %v709 = vld [vmem:[%s0 + $0x20] sm:$0xf]
    %v710 = vld [vmem:[%s0 + $0x24] sm:$0xf]
    %v711 = vld [vmem:[%s0 + $0x28] sm:$0xf]
    %v712 = vld [vmem:[%s0 + $0x2c] sm:$0xf]
    %v713 = vld [vmem:[%s0 + $0x30] sm:$0xf]
    %v714 = vld [vmem:[%s0 + $0x34] sm:$0xf]
    %v715 = vld [vmem:[%s0 + $0x38] sm:$0xf]
    %v716 = vld [vmem:[%s0 + $0x3c] sm:$0xf]
    %v717 = vld [vmem:[%s0 + $0x40] sm:$0xf]
    %v718 = vld [vmem:[%s0 + $0x44] sm:$0xf]
    %v719 = vld [vmem:[%s0 + $0x48] sm:$0xf]
    %v720 = vld [vmem:[%s0 + $0x4c] sm:$0x1]
    %s721 = scalar_lea.vmem [#allocation2], 96
    %v722 = vld [vmem:[%s721] sm:$0xf]
    %v723 = vld [vmem:[%s721 + $0x4] sm:$0xf]
    %v724 = vld [vmem:[%s721 + $0x8] sm:$0xf]
    %v725 = vld [vmem:[%s721 + $0xc] sm:$0xf]
    %v726 = vld [vmem:[%s721 + $0x10] sm:$0xf]
    %v727 = vld [vmem:[%s721 + $0x14] sm:$0xf]
    %v728 = vld [vmem:[%s721 + $0x18] sm:$0xf]
    %v729 = vld [vmem:[%s721 + $0x1c] sm:$0xf]
    %v749 = vunpack.c.l.b16 %v702
    %v750 = vunpack.c.l.b16 %v703
    %v751 = vunpack.c.l.b16 %v704
    %v752 = vunpack.c.l.b16 %v705
    %v753 = vunpack.c.l.b16 %v706
    %v754 = vunpack.c.l.b16 %v707
    %v755 = vunpack.c.l.b16 %v708
    %v756 = vunpack.c.l.b16 %v709
    %v757 = vunpack.c.l.b16 %v710
    %v758 = vunpack.c.l.b16 %v711
    %v759 = vunpack.c.l.b16 %v712
    %v760 = vunpack.c.l.b16 %v713
    %v761 = vunpack.c.l.b16 %v714
    %v762 = vunpack.c.l.b16 %v715
    %v763 = vunpack.c.l.b16 %v716
    %v764 = vunpack.c.l.b16 %v717
    %v765 = vunpack.c.l.b16 %v718
    %v766 = vunpack.c.l.b16 %v719
    %v767 = vunpack.c.l.b16 %v720
    %v768 = vpack.c.b16 %v750, %v749
    %v769 = vpack.c.b16 %v752, %v751
    %v770 = vpack.c.b16 %v754, %v753
    %v771 = vpack.c.b16 %v756, %v755
    %v772 = vpack.c.b16 %v758, %v757
    %v773 = vpack.c.b16 %v760, %v759
    %v774 = vpack.c.b16 %v762, %v761
    %v775 = vpack.c.b16 %v764, %v763
    %v776 = vpack.c.b16 %v766, %v765
    %v777 = vpack.c.b16 %v767, %v767
    %vm778 = vcmask 1044480
    %v779 = vrot.slane %v768, 3
    %v780 = vrot.slane %v769, 3
    %v781 = vsel %vm778, %v779, %v780
    %v782 = vrot.slane %v770, 3
    %v783 = vsel %vm778, %v780, %v782
    %v784 = vrot.slane %v771, 3
    %v785 = vsel %vm778, %v782, %v784
    %v786 = vrot.slane %v772, 3
    %v787 = vsel %vm778, %v784, %v786
    %v788 = vrot.slane %v773, 3
    %v789 = vsel %vm778, %v786, %v788
    %v790 = vrot.slane %v774, 3
    %v791 = vsel %vm778, %v788, %v790
    %v792 = vrot.slane %v775, 3
    %v793 = vsel %vm778, %v790, %v792
    %v794 = vrot.slane %v776, 3
    %v795 = vsel %vm778, %v792, %v794
    %v796 = vrot.slane %v777, 3
    %v797 = vsel %vm778, %v794, %v796
    %v806 = vunpack.c.l.b16 %v722
    %v807 = vunpack.c.l.b16 %v723
    %v808 = vunpack.c.l.b16 %v724
    %v809 = vunpack.c.l.b16 %v725
    %v810 = vunpack.c.l.b16 %v726
    %v811 = vunpack.c.l.b16 %v727
    %v812 = vunpack.c.l.b16 %v728
    %v813 = vunpack.c.l.b16 %v729
    %v814 = vpack.c.b16 %v807, %v806
    %v815 = vpack.c.b16 %v809, %v808
    %v816 = vpack.c.b16 %v811, %v810
    %v817 = vpack.c.b16 %v813, %v812
    %v823 = vsel %vm213, %v781, 0
    %v826 = vsel %vm213, %v783, 0
    %v829 = vsel %vm213, %v785, 0
    %v832 = vsel %vm213, %v787, 0
    %v835 = vsel %vm213, %v789, 0
    %v838 = vsel %vm213, %v791, 0
    %v841 = vsel %vm213, %v793, 0
    %v844 = vsel %vm213, %v795, 0
    %v847 = vsel %vm213, %v797, 0
    %849 = vmatprep.subr.bf16.mxu0 0
    %850 = vmatpush1.bf16.msra.mxu0 0
    %851 = vmatprep.subr.bf16.mxu0 0
    %852 = vmatpush1.bf16.msra.mxu0 0
    %853 = vmatprep.subr.bf16.mxu0 0
    %854 = vmatpush1.bf16.msra.mxu0 0
    %855 = vmatprep.subr.bf16.mxu0 0
    %856 = vmatpush1.bf16.msra.mxu0 0
    %857 = vmatprep.subr.bf16.mxu0 0
    %858 = vmatpush1.bf16.msra.mxu0 %v817
    %859 = vmatprep.subr.bf16.mxu0 0
    %860 = vmatpush1.bf16.msra.mxu0 %v816
    %861 = vmatprep.subr.bf16.mxu0 0
    %862 = vmatpush1.bf16.msra.mxu0 %v815
    %863 = vmatprep.subr.bf16.mxu0 0
    %864 = vmatpush1.bf16.msra.mxu0 %v814
    %865 = vmatprep.subr.bf16.mxu0 0
    %866 = vmatpush2.bf16.msra.mxu0 0
    %867 = vmatprep.subr.bf16.mxu0 0
    %868 = vmatpush2.bf16.msra.mxu0 0
    %869 = vmatprep.subr.bf16.mxu0 0
    %870 = vmatpush2.bf16.msra.mxu0 0
    %871 = vmatprep.subr.bf16.mxu0 0
    %872 = vmatpush2.bf16.msra.mxu0 0
    %873 = vmatprep.subr.bf16.mxu0 0
    %874 = vmatpush2.bf16.msra.mxu0 0
    %875 = vmatprep.subr.bf16.mxu0 0
    %876 = vmatpush2.bf16.msra.mxu0 0
    %877 = vmatprep.subr.bf16.mxu0 0
    %878 = vmatpush2.bf16.msra.mxu0 0
    %879 = vmatprep.subr.bf16.mxu0 0
    %880 = vmatpush2.bf16.msra.mxu0 0
    %881 = vmatprep.mubr.bf16.mxu0 0
    %882 = vmatmul.mubr.bf16.gmra.mxu0 %v823
    %v883 = vpop.f32.mrf.mxu0
    %v884 = vadd.f32 0.0, %v883
    %v885 = vpop.f32.mrf.mxu0
    %v886 = vpop.f32.mrf.mxu0
    %v887 = vadd.f32 0.0, %v886
    %v888 = vpop.f32.mrf.mxu0
    %889 = vmatprep.mubr.bf16.mxu0 0
    %890 = vmatmul.mubr.bf16.gmra.mxu0 %v826
    %v891 = vpop.f32.mrf.mxu0
    %v892 = vadd.f32 0.0, %v891
    %v893 = vpop.f32.mrf.mxu0
    %v894 = vpop.f32.mrf.mxu0
    %v895 = vadd.f32 0.0, %v894
    %v896 = vpop.f32.mrf.mxu0
    %897 = vmatprep.mubr.bf16.mxu0 0
    %898 = vmatmul.mubr.bf16.gmra.mxu0 %v829
    %v899 = vpop.f32.mrf.mxu0
    %v900 = vadd.f32 0.0, %v899
    %v901 = vpop.f32.mrf.mxu0
    %v902 = vpop.f32.mrf.mxu0
    %v903 = vadd.f32 0.0, %v902
    %v904 = vpop.f32.mrf.mxu0
    %905 = vmatprep.mubr.bf16.mxu0 0
    %906 = vmatmul.mubr.bf16.gmra.mxu0 %v832
    %v907 = vpop.f32.mrf.mxu0
    %v908 = vadd.f32 0.0, %v907
    %v909 = vpop.f32.mrf.mxu0
    %v910 = vpop.f32.mrf.mxu0
    %v911 = vadd.f32 0.0, %v910
    %v912 = vpop.f32.mrf.mxu0
    %913 = vmatprep.mubr.bf16.mxu0 0
    %914 = vmatmul.mubr.bf16.gmra.mxu0 %v835
    %v915 = vpop.f32.mrf.mxu0
    %v916 = vadd.f32 0.0, %v915
    %v917 = vpop.f32.mrf.mxu0
    %v918 = vpop.f32.mrf.mxu0
    %v919 = vadd.f32 0.0, %v918
    %v920 = vpop.f32.mrf.mxu0
    %921 = vmatprep.mubr.bf16.mxu0 0
    %922 = vmatmul.mubr.bf16.gmra.mxu0 %v838
    %v923 = vpop.f32.mrf.mxu0
    %v924 = vadd.f32 0.0, %v923
    %v925 = vpop.f32.mrf.mxu0
    %v926 = vpop.f32.mrf.mxu0
    %v927 = vadd.f32 0.0, %v926
    %v928 = vpop.f32.mrf.mxu0
    %929 = vmatprep.mubr.bf16.mxu0 0
    %930 = vmatmul.mubr.bf16.gmra.mxu0 %v841
    %v931 = vpop.f32.mrf.mxu0
    %v932 = vadd.f32 0.0, %v931
    %v933 = vpop.f32.mrf.mxu0
    %v934 = vpop.f32.mrf.mxu0
    %v935 = vadd.f32 0.0, %v934
    %v936 = vpop.f32.mrf.mxu0
    %937 = vmatprep.mubr.bf16.mxu0 0
    %938 = vmatmul.mubr.bf16.gmra.mxu0 %v844
    %v939 = vpop.f32.mrf.mxu0
    %v940 = vadd.f32 0.0, %v939
    %v941 = vpop.f32.mrf.mxu0
    %v942 = vpop.f32.mrf.mxu0
    %v943 = vadd.f32 0.0, %v942
    %v944 = vpop.f32.mrf.mxu0
    %945 = vmatprep.mubr.bf16.mxu0 0
    %946 = vmatmul.mubr.bf16.gmra.mxu0 %v847
    %v947 = vpop.f32.mrf.mxu0
    %v948 = vadd.f32 0.0, %v947
    %v949 = vpop.f32.mrf.mxu0
    %v950 = vpop.f32.mrf.mxu0
    %v951 = vadd.f32 0.0, %v950
    %v952 = vpop.f32.mrf.mxu0
    %953 = vdwg.mxu0
    %v954 = vadd.f32 %v684, %v884
    %v955 = vadd.f32 %v685, %v887
    %v956 = vadd.f32 %v686, %v892
    %v957 = vadd.f32 %v687, %v895
    %v958 = vadd.f32 %v688, %v900
    %v959 = vadd.f32 %v689, %v903
    %v960 = vadd.f32 %v690, %v908
    %v961 = vadd.f32 %v691, %v911
    %v962 = vadd.f32 %v692, %v916
    %v963 = vadd.f32 %v693, %v919
    %v964 = vadd.f32 %v694, %v924
    %v965 = vadd.f32 %v695, %v927
    %v966 = vadd.f32 %v696, %v932
    %v967 = vadd.f32 %v697, %v935
    %v968 = vadd.f32 %v698, %v940
    %v969 = vadd.f32 %v699, %v943
    %v970 = vadd.f32 %v700, %v948
    %v971 = vadd.f32 %v701, %v951
    %v972 = vld [vmem:[%s0 + $0x4c] sm:$0x3]
    %s973 = scalar_lea.vmem [#allocation2], 128
    %v974 = vld [vmem:[%s973] sm:$0xf]
    %v975 = vld [vmem:[%s973 + $0x4] sm:$0xf]
    %v976 = vld [vmem:[%s973 + $0x8] sm:$0xf]
    %v977 = vld [vmem:[%s973 + $0xc] sm:$0xf]
    %v978 = vld [vmem:[%s973 + $0x10] sm:$0xf]
    %v979 = vld [vmem:[%s973 + $0x14] sm:$0xf]
    %v980 = vld [vmem:[%s973 + $0x18] sm:$0xf]
    %v981 = vld [vmem:[%s973 + $0x1c] sm:$0xf]
    %v983 = vunpack.c.l.b16 %v972
    %v984 = vpack.c.b16 %v983, %v983
    %vm985 = vsmask.f32 4352
    %v987 = vshrl.u32 %v768, 16
    %v989 = vrot.slane %v987, 3
    %v990 = vshll.u32 %v768, 16
    %v992 = vrot.slane %v990, 4
    %v993 = vor.u32 %v989, %v992
    %v995 = vshrl.u32 %v769, 16
    %v997 = vrot.slane %v995, 3
    %v998 = vshll.u32 %v769, 16
    %v1000 = vrot.slane %v998, 4
    %v1001 = vor.u32 %v997, %v1000
    %v1002 = vsel %vm985, %v993, %v1001
    %v1004 = vshrl.u32 %v770, 16
    %v1006 = vrot.slane %v1004, 3
    %v1007 = vshll.u32 %v770, 16
    %v1009 = vrot.slane %v1007, 4
    %v1010 = vor.u32 %v1006, %v1009
    %v1011 = vsel %vm985, %v1001, %v1010
    %v1013 = vshrl.u32 %v771, 16
    %v1015 = vrot.slane %v1013, 3
    %v1016 = vshll.u32 %v771, 16
    %v1018 = vrot.slane %v1016, 4
    %v1019 = vor.u32 %v1015, %v1018
    %v1020 = vsel %vm985, %v1010, %v1019
    %v1022 = vshrl.u32 %v772, 16
    %v1024 = vrot.slane %v1022, 3
    %v1025 = vshll.u32 %v772, 16
    %v1027 = vrot.slane %v1025, 4
    %v1028 = vor.u32 %v1024, %v1027
    %v1029 = vsel %vm985, %v1019, %v1028
    %v1031 = vshrl.u32 %v773, 16
    %v1033 = vrot.slane %v1031, 3
    %v1034 = vshll.u32 %v773, 16
    %v1036 = vrot.slane %v1034, 4
    %v1037 = vor.u32 %v1033, %v1036
    %v1038 = vsel %vm985, %v1028, %v1037
    %v1040 = vshrl.u32 %v774, 16
    %v1042 = vrot.slane %v1040, 3
    %v1043 = vshll.u32 %v774, 16
    %v1045 = vrot.slane %v1043, 4
    %v1046 = vor.u32 %v1042, %v1045
    %v1047 = vsel %vm985, %v1037, %v1046
    %v1049 = vshrl.u32 %v775, 16
    %v1051 = vrot.slane %v1049, 3
    %v1052 = vshll.u32 %v775, 16
    %v1054 = vrot.slane %v1052, 4
    %v1055 = vor.u32 %v1051, %v1054
    %v1056 = vsel %vm985, %v1046, %v1055
    %v1058 = vshrl.u32 %v776, 16
    %v1060 = vrot.slane %v1058, 3
    %v1061 = vshll.u32 %v776, 16
    %v1063 = vrot.slane %v1061, 4
    %v1064 = vor.u32 %v1060, %v1063
    %v1065 = vsel %vm985, %v1055, %v1064
    %v1067 = vshrl.u32 %v984, 16
    %v1069 = vrot.slane %v1067, 3
    %v1070 = vshll.u32 %v984, 16
    %v1072 = vrot.slane %v1070, 4
    %v1073 = vor.u32 %v1069, %v1072
    %v1074 = vsel %vm985, %v1064, %v1073
    %v1083 = vunpack.c.l.b16 %v974
    %v1084 = vunpack.c.l.b16 %v975
    %v1085 = vunpack.c.l.b16 %v976
    %v1086 = vunpack.c.l.b16 %v977
    %v1087 = vunpack.c.l.b16 %v978
    %v1088 = vunpack.c.l.b16 %v979
    %v1089 = vunpack.c.l.b16 %v980
    %v1090 = vunpack.c.l.b16 %v981
    %v1091 = vpack.c.b16 %v1084, %v1083
    %v1092 = vpack.c.b16 %v1086, %v1085
    %v1093 = vpack.c.b16 %v1088, %v1087
    %v1094 = vpack.c.b16 %v1090, %v1089
    %v1100 = vsel %vm213, %v1002, 0
    %v1103 = vsel %vm213, %v1011, 0
    %v1106 = vsel %vm213, %v1020, 0
    %v1109 = vsel %vm213, %v1029, 0
    %v1112 = vsel %vm213, %v1038, 0
    %v1115 = vsel %vm213, %v1047, 0
    %v1118 = vsel %vm213, %v1056, 0
    %v1121 = vsel %vm213, %v1065, 0
    %v1124 = vsel %vm213, %v1074, 0
    %1126 = vmatprep.subr.bf16.mxu0 0
    %1127 = vmatpush1.bf16.msra.mxu0 0
    %1128 = vmatprep.subr.bf16.mxu0 0
    %1129 = vmatpush1.bf16.msra.mxu0 0
    %1130 = vmatprep.subr.bf16.mxu0 0
    %1131 = vmatpush1.bf16.msra.mxu0 0
    %1132 = vmatprep.subr.bf16.mxu0 0
    %1133 = vmatpush1.bf16.msra.mxu0 0
    %1134 = vmatprep.subr.bf16.mxu0 0
    %1135 = vmatpush1.bf16.msra.mxu0 %v1094
    %1136 = vmatprep.subr.bf16.mxu0 0
    %1137 = vmatpush1.bf16.msra.mxu0 %v1093
    %1138 = vmatprep.subr.bf16.mxu0 0
    %1139 = vmatpush1.bf16.msra.mxu0 %v1092
    %1140 = vmatprep.subr.bf16.mxu0 0
    %1141 = vmatpush1.bf16.msra.mxu0 %v1091
    %1142 = vmatprep.subr.bf16.mxu0 0
    %1143 = vmatpush2.bf16.msra.mxu0 0
    %1144 = vmatprep.subr.bf16.mxu0 0
    %1145 = vmatpush2.bf16.msra.mxu0 0
    %1146 = vmatprep.subr.bf16.mxu0 0
    %1147 = vmatpush2.bf16.msra.mxu0 0
    %1148 = vmatprep.subr.bf16.mxu0 0
    %1149 = vmatpush2.bf16.msra.mxu0 0
    %1150 = vmatprep.subr.bf16.mxu0 0
    %1151 = vmatpush2.bf16.msra.mxu0 0
    %1152 = vmatprep.subr.bf16.mxu0 0
    %1153 = vmatpush2.bf16.msra.mxu0 0
    %1154 = vmatprep.subr.bf16.mxu0 0
    %1155 = vmatpush2.bf16.msra.mxu0 0
    %1156 = vmatprep.subr.bf16.mxu0 0
    %1157 = vmatpush2.bf16.msra.mxu0 0
    %1158 = vmatprep.mubr.bf16.mxu0 0
    %1159 = vmatmul.mubr.bf16.gmra.mxu0 %v1100
    %v1160 = vpop.f32.mrf.mxu0
    %v1161 = vadd.f32 0.0, %v1160
    %v1162 = vpop.f32.mrf.mxu0
    %v1163 = vpop.f32.mrf.mxu0
    %v1164 = vadd.f32 0.0, %v1163
    %v1165 = vpop.f32.mrf.mxu0
    %1166 = vmatprep.mubr.bf16.mxu0 0
    %1167 = vmatmul.mubr.bf16.gmra.mxu0 %v1103
    %v1168 = vpop.f32.mrf.mxu0
    %v1169 = vadd.f32 0.0, %v1168
    %v1170 = vpop.f32.mrf.mxu0
    %v1171 = vpop.f32.mrf.mxu0
    %v1172 = vadd.f32 0.0, %v1171
    %v1173 = vpop.f32.mrf.mxu0
    %1174 = vmatprep.mubr.bf16.mxu0 0
    %1175 = vmatmul.mubr.bf16.gmra.mxu0 %v1106
    %v1176 = vpop.f32.mrf.mxu0
    %v1177 = vadd.f32 0.0, %v1176
    %v1178 = vpop.f32.mrf.mxu0
    %v1179 = vpop.f32.mrf.mxu0
    %v1180 = vadd.f32 0.0, %v1179
    %v1181 = vpop.f32.mrf.mxu0
    %1182 = vmatprep.mubr.bf16.mxu0 0
    %1183 = vmatmul.mubr.bf16.gmra.mxu0 %v1109
    %v1184 = vpop.f32.mrf.mxu0
    %v1185 = vadd.f32 0.0, %v1184
    %v1186 = vpop.f32.mrf.mxu0
    %v1187 = vpop.f32.mrf.mxu0
    %v1188 = vadd.f32 0.0, %v1187
    %v1189 = vpop.f32.mrf.mxu0
    %1190 = vmatprep.mubr.bf16.mxu0 0
    %1191 = vmatmul.mubr.bf16.gmra.mxu0 %v1112
    %v1192 = vpop.f32.mrf.mxu0
    %v1193 = vadd.f32 0.0, %v1192
    %v1194 = vpop.f32.mrf.mxu0
    %v1195 = vpop.f32.mrf.mxu0
    %v1196 = vadd.f32 0.0, %v1195
    %v1197 = vpop.f32.mrf.mxu0
    %1198 = vmatprep.mubr.bf16.mxu0 0
    %1199 = vmatmul.mubr.bf16.gmra.mxu0 %v1115
    %v1200 = vpop.f32.mrf.mxu0
    %v1201 = vadd.f32 0.0, %v1200
    %v1202 = vpop.f32.mrf.mxu0
    %v1203 = vpop.f32.mrf.mxu0
    %v1204 = vadd.f32 0.0, %v1203
    %v1205 = vpop.f32.mrf.mxu0
    %1206 = vmatprep.mubr.bf16.mxu0 0
    %1207 = vmatmul.mubr.bf16.gmra.mxu0 %v1118
    %v1208 = vpop.f32.mrf.mxu0
    %v1209 = vadd.f32 0.0, %v1208
    %v1210 = vpop.f32.mrf.mxu0
    %v1211 = vpop.f32.mrf.mxu0
    %v1212 = vadd.f32 0.0, %v1211
    %v1213 = vpop.f32.mrf.mxu0
    %1214 = vmatprep.mubr.bf16.mxu0 0
    %1215 = vmatmul.mubr.bf16.gmra.mxu0 %v1121
    %v1216 = vpop.f32.mrf.mxu0
    %v1217 = vadd.f32 0.0, %v1216
    %v1218 = vpop.f32.mrf.mxu0
    %v1219 = vpop.f32.mrf.mxu0
    %v1220 = vadd.f32 0.0, %v1219
    %v1221 = vpop.f32.mrf.mxu0
    %1222 = vmatprep.mubr.bf16.mxu0 0
    %1223 = vmatmul.mubr.bf16.gmra.mxu0 %v1124
    %v1224 = vpop.f32.mrf.mxu0
    %v1225 = vadd.f32 0.0, %v1224
    %v1226 = vpop.f32.mrf.mxu0
    %v1227 = vpop.f32.mrf.mxu0
    %v1228 = vadd.f32 0.0, %v1227
    %v1229 = vpop.f32.mrf.mxu0
    %1230 = vdwg.mxu0
    %v1231 = vadd.f32 %v954, %v1161
    %v1232 = vadd.f32 %v955, %v1164
    %v1233 = vadd.f32 %v956, %v1169
    %v1234 = vadd.f32 %v957, %v1172
    %v1235 = vadd.f32 %v958, %v1177
    %v1236 = vadd.f32 %v959, %v1180
    %v1237 = vadd.f32 %v960, %v1185
    %v1238 = vadd.f32 %v961, %v1188
    %v1239 = vadd.f32 %v962, %v1193
    %v1240 = vadd.f32 %v963, %v1196
    %v1241 = vadd.f32 %v964, %v1201
    %v1242 = vadd.f32 %v965, %v1204
    %v1243 = vadd.f32 %v966, %v1209
    %v1244 = vadd.f32 %v967, %v1212
    %v1245 = vadd.f32 %v968, %v1217
    %v1246 = vadd.f32 %v969, %v1220
    %v1247 = vadd.f32 %v970, %v1225
    %v1248 = vadd.f32 %v971, %v1228
    %s1249 = scalar_lea.vmem [#allocation2], 160
    %v1250 = vld [vmem:[%s1249] sm:$0xf]
    %v1251 = vld [vmem:[%s1249 + $0x4] sm:$0xf]
    %v1252 = vld [vmem:[%s1249 + $0x8] sm:$0xf]
    %v1253 = vld [vmem:[%s1249 + $0xc] sm:$0xf]
    %v1254 = vld [vmem:[%s1249 + $0x10] sm:$0xf]
    %v1255 = vld [vmem:[%s1249 + $0x14] sm:$0xf]
    %v1256 = vld [vmem:[%s1249 + $0x18] sm:$0xf]
    %v1257 = vld [vmem:[%s1249 + $0x1c] sm:$0xf]
    %v1258 = vpack.c.b16 %v751, %v750
    %v1259 = vpack.c.b16 %v753, %v752
    %v1260 = vpack.c.b16 %v755, %v754
    %v1261 = vpack.c.b16 %v757, %v756
    %v1262 = vpack.c.b16 %v759, %v758
    %v1263 = vpack.c.b16 %v761, %v760
    %v1264 = vpack.c.b16 %v763, %v762
    %v1265 = vpack.c.b16 %v765, %v764
    %v1266 = vpack.c.b16 %v983, %v766
    %v1275 = vunpack.c.l.b16 %v1250
    %v1276 = vunpack.c.l.b16 %v1251
    %v1277 = vunpack.c.l.b16 %v1252
    %v1278 = vunpack.c.l.b16 %v1253
    %v1279 = vunpack.c.l.b16 %v1254
    %v1280 = vunpack.c.l.b16 %v1255
    %v1281 = vunpack.c.l.b16 %v1256
    %v1282 = vunpack.c.l.b16 %v1257
    %v1283 = vpack.c.b16 %v1276, %v1275
    %v1284 = vpack.c.b16 %v1278, %v1277
    %v1285 = vpack.c.b16 %v1280, %v1279
    %v1286 = vpack.c.b16 %v1282, %v1281
    %v1292 = vsel %vm213, %v1258, 0
    %v1295 = vsel %vm213, %v1259, 0
    %v1298 = vsel %vm213, %v1260, 0
    %v1301 = vsel %vm213, %v1261, 0
    %v1304 = vsel %vm213, %v1262, 0
    %v1307 = vsel %vm213, %v1263, 0
    %v1310 = vsel %vm213, %v1264, 0
    %v1313 = vsel %vm213, %v1265, 0
    %v1316 = vsel %vm213, %v1266, 0
    %1318 = vmatprep.subr.bf16.mxu0 0
    %1319 = vmatpush1.bf16.msra.mxu0 0
    %1320 = vmatprep.subr.bf16.mxu0 0
    %1321 = vmatpush1.bf16.msra.mxu0 0
    %1322 = vmatprep.subr.bf16.mxu0 0
    %1323 = vmatpush1.bf16.msra.mxu0 0
    %1324 = vmatprep.subr.bf16.mxu0 0
    %1325 = vmatpush1.bf16.msra.mxu0 0
    %1326 = vmatprep.subr.bf16.mxu0 0
    %1327 = vmatpush1.bf16.msra.mxu0 %v1286
    %1328 = vmatprep.subr.bf16.mxu0 0
    %1329 = vmatpush1.bf16.msra.mxu0 %v1285
    %1330 = vmatprep.subr.bf16.mxu0 0
    %1331 = vmatpush1.bf16.msra.mxu0 %v1284
    %1332 = vmatprep.subr.bf16.mxu0 0
    %1333 = vmatpush1.bf16.msra.mxu0 %v1283
    %1334 = vmatprep.subr.bf16.mxu0 0
    %1335 = vmatpush2.bf16.msra.mxu0 0
    %1336 = vmatprep.subr.bf16.mxu0 0
    %1337 = vmatpush2.bf16.msra.mxu0 0
    %1338 = vmatprep.subr.bf16.mxu0 0
    %1339 = vmatpush2.bf16.msra.mxu0 0
    %1340 = vmatprep.subr.bf16.mxu0 0
    %1341 = vmatpush2.bf16.msra.mxu0 0
    %1342 = vmatprep.subr.bf16.mxu0 0
    %1343 = vmatpush2.bf16.msra.mxu0 0
    %1344 = vmatprep.subr.bf16.mxu0 0
    %1345 = vmatpush2.bf16.msra.mxu0 0
    %1346 = vmatprep.subr.bf16.mxu0 0
    %1347 = vmatpush2.bf16.msra.mxu0 0
    %1348 = vmatprep.subr.bf16.mxu0 0
    %1349 = vmatpush2.bf16.msra.mxu0 0
    %1350 = vmatprep.mubr.bf16.mxu0 0
    %1351 = vmatmul.mubr.bf16.gmra.mxu0 %v1292
    %v1352 = vpop.f32.mrf.mxu0
    %v1353 = vadd.f32 0.0, %v1352
    %v1354 = vpop.f32.mrf.mxu0
    %v1355 = vpop.f32.mrf.mxu0
    %v1356 = vadd.f32 0.0, %v1355
    %v1357 = vpop.f32.mrf.mxu0
    %1358 = vmatprep.mubr.bf16.mxu0 0
    %1359 = vmatmul.mubr.bf16.gmra.mxu0 %v1295
    %v1360 = vpop.f32.mrf.mxu0
    %v1361 = vadd.f32 0.0, %v1360
    %v1362 = vpop.f32.mrf.mxu0
    %v1363 = vpop.f32.mrf.mxu0
    %v1364 = vadd.f32 0.0, %v1363
    %v1365 = vpop.f32.mrf.mxu0
    %1366 = vmatprep.mubr.bf16.mxu0 0
    %1367 = vmatmul.mubr.bf16.gmra.mxu0 %v1298
    %v1368 = vpop.f32.mrf.mxu0
    %v1369 = vadd.f32 0.0, %v1368
    %v1370 = vpop.f32.mrf.mxu0
    %v1371 = vpop.f32.mrf.mxu0
    %v1372 = vadd.f32 0.0, %v1371
    %v1373 = vpop.f32.mrf.mxu0
    %1374 = vmatprep.mubr.bf16.mxu0 0
    %1375 = vmatmul.mubr.bf16.gmra.mxu0 %v1301
    %v1376 = vpop.f32.mrf.mxu0
    %v1377 = vadd.f32 0.0, %v1376
    %v1378 = vpop.f32.mrf.mxu0
    %v1379 = vpop.f32.mrf.mxu0
    %v1380 = vadd.f32 0.0, %v1379
    %v1381 = vpop.f32.mrf.mxu0
    %1382 = vmatprep.mubr.bf16.mxu0 0
    %1383 = vmatmul.mubr.bf16.gmra.mxu0 %v1304
    %v1384 = vpop.f32.mrf.mxu0
    %v1385 = vadd.f32 0.0, %v1384
    %v1386 = vpop.f32.mrf.mxu0
    %v1387 = vpop.f32.mrf.mxu0
    %v1388 = vadd.f32 0.0, %v1387
    %v1389 = vpop.f32.mrf.mxu0
    %1390 = vmatprep.mubr.bf16.mxu0 0
    %1391 = vmatmul.mubr.bf16.gmra.mxu0 %v1307
    %v1392 = vpop.f32.mrf.mxu0
    %v1393 = vadd.f32 0.0, %v1392
    %v1394 = vpop.f32.mrf.mxu0
    %v1395 = vpop.f32.mrf.mxu0
    %v1396 = vadd.f32 0.0, %v1395
    %v1397 = vpop.f32.mrf.mxu0
    %1398 = vmatprep.mubr.bf16.mxu0 0
    %1399 = vmatmul.mubr.bf16.gmra.mxu0 %v1310
    %v1400 = vpop.f32.mrf.mxu0
    %v1401 = vadd.f32 0.0, %v1400
    %v1402 = vpop.f32.mrf.mxu0
    %v1403 = vpop.f32.mrf.mxu0
    %v1404 = vadd.f32 0.0, %v1403
    %v1405 = vpop.f32.mrf.mxu0
    %1406 = vmatprep.mubr.bf16.mxu0 0
    %1407 = vmatmul.mubr.bf16.gmra.mxu0 %v1313
    %v1408 = vpop.f32.mrf.mxu0
    %v1409 = vadd.f32 0.0, %v1408
    %v1410 = vpop.f32.mrf.mxu0
    %v1411 = vpop.f32.mrf.mxu0
    %v1412 = vadd.f32 0.0, %v1411
    %v1413 = vpop.f32.mrf.mxu0
    %1414 = vmatprep.mubr.bf16.mxu0 0
    %1415 = vmatmul.mubr.bf16.gmra.mxu0 %v1316
    %v1416 = vpop.f32.mrf.mxu0
    %v1417 = vadd.f32 0.0, %v1416
    %v1418 = vpop.f32.mrf.mxu0
    %v1419 = vpop.f32.mrf.mxu0
    %v1420 = vadd.f32 0.0, %v1419
    %v1421 = vpop.f32.mrf.mxu0
    %1422 = vdwg.mxu0
    %v1423 = vadd.f32 %v1231, %v1353
    %v1424 = vadd.f32 %v1232, %v1356
    %v1425 = vadd.f32 %v1233, %v1361
    %v1426 = vadd.f32 %v1234, %v1364
    %v1427 = vadd.f32 %v1235, %v1369
    %v1428 = vadd.f32 %v1236, %v1372
    %v1429 = vadd.f32 %v1237, %v1377
    %v1430 = vadd.f32 %v1238, %v1380
    %v1431 = vadd.f32 %v1239, %v1385
    %v1432 = vadd.f32 %v1240, %v1388
    %v1433 = vadd.f32 %v1241, %v1393
    %v1434 = vadd.f32 %v1242, %v1396
    %v1435 = vadd.f32 %v1243, %v1401
    %v1436 = vadd.f32 %v1244, %v1404
    %v1437 = vadd.f32 %v1245, %v1409
    %v1438 = vadd.f32 %v1246, %v1412
    %v1439 = vadd.f32 %v1247, %v1417
    %v1440 = vadd.f32 %v1248, %v1420
    %v1441 = vld [vmem:[%s0 + $0xc] sm:$0xc]
    %v1442 = vld [vmem:[%s0 + $0x10] sm:$0xf]
    %v1443 = vld [vmem:[%s0 + $0x14] sm:$0xf]
    %v1444 = vld [vmem:[%s0 + $0x18] sm:$0xf]
    %v1445 = vld [vmem:[%s0 + $0x1c] sm:$0xf]
    %v1446 = vld [vmem:[%s0 + $0x20] sm:$0xf]
    %v1447 = vld [vmem:[%s0 + $0x24] sm:$0xf]
    %v1448 = vld [vmem:[%s0 + $0x28] sm:$0xf]
    %v1449 = vld [vmem:[%s0 + $0x2c] sm:$0xf]
    %v1450 = vld [vmem:[%s0 + $0x30] sm:$0xf]
    %v1451 = vld [vmem:[%s0 + $0x34] sm:$0xf]
    %v1452 = vld [vmem:[%s0 + $0x38] sm:$0xf]
    %v1453 = vld [vmem:[%s0 + $0x3c] sm:$0xf]
    %v1454 = vld [vmem:[%s0 + $0x40] sm:$0xf]
    %v1455 = vld [vmem:[%s0 + $0x44] sm:$0xf]
    %v1456 = vld [vmem:[%s0 + $0x48] sm:$0xf]
    %v1457 = vld [vmem:[%s0 + $0x4c] sm:$0xf]
    %v1458 = vld [vmem:[%s0 + $0x50] sm:$0xf]
    %s1459 = scalar_lea.vmem [#allocation2], 192
    %v1460 = vld [vmem:[%s1459] sm:$0xf]
    %v1461 = vld [vmem:[%s1459 + $0x4] sm:$0xf]
    %v1462 = vld [vmem:[%s1459 + $0x8] sm:$0xf]
    %v1463 = vld [vmem:[%s1459 + $0xc] sm:$0xf]
    %v1464 = vld [vmem:[%s1459 + $0x10] sm:$0xf]
    %v1465 = vld [vmem:[%s1459 + $0x14] sm:$0xf]
    %v1466 = vld [vmem:[%s1459 + $0x18] sm:$0xf]
    %v1467 = vld [vmem:[%s1459 + $0x1c] sm:$0xf]
    %v1486 = vunpack.c.l.b16 %v1441
    %v1487 = vunpack.c.l.b16 %v1442
    %v1488 = vunpack.c.l.b16 %v1443
    %v1489 = vunpack.c.l.b16 %v1444
    %v1490 = vunpack.c.l.b16 %v1445
    %v1491 = vunpack.c.l.b16 %v1446
    %v1492 = vunpack.c.l.b16 %v1447
    %v1493 = vunpack.c.l.b16 %v1448
    %v1494 = vunpack.c.l.b16 %v1449
    %v1495 = vunpack.c.l.b16 %v1450
    %v1496 = vunpack.c.l.b16 %v1451
    %v1497 = vunpack.c.l.b16 %v1452
    %v1498 = vunpack.c.l.b16 %v1453
    %v1499 = vunpack.c.l.b16 %v1454
    %v1500 = vunpack.c.l.b16 %v1455
    %v1501 = vunpack.c.l.b16 %v1456
    %v1502 = vunpack.c.l.b16 %v1457
    %v1503 = vunpack.c.l.b16 %v1458
    %v1504 = vpack.c.b16 %v1487, %v1486
    %v1505 = vpack.c.b16 %v1489, %v1488
    %v1506 = vpack.c.b16 %v1491, %v1490
    %v1507 = vpack.c.b16 %v1493, %v1492
    %v1508 = vpack.c.b16 %v1495, %v1494
    %v1509 = vpack.c.b16 %v1497, %v1496
    %v1510 = vpack.c.b16 %v1499, %v1498
    %v1511 = vpack.c.b16 %v1501, %v1500
    %v1512 = vpack.c.b16 %v1503, %v1502
    %vm1513 = vcmask 1045504
    %v1514 = vrot.slane %v1504, 2
    %v1515 = vrot.slane %v1505, 2
    %v1516 = vsel %vm1513, %v1514, %v1515
    %v1517 = vrot.slane %v1506, 2
    %v1518 = vsel %vm1513, %v1515, %v1517
    %v1519 = vrot.slane %v1507, 2
    %v1520 = vsel %vm1513, %v1517, %v1519
    %v1521 = vrot.slane %v1508, 2
    %v1522 = vsel %vm1513, %v1519, %v1521
    %v1523 = vrot.slane %v1509, 2
    %v1524 = vsel %vm1513, %v1521, %v1523
    %v1525 = vrot.slane %v1510, 2
    %v1526 = vsel %vm1513, %v1523, %v1525
    %v1527 = vrot.slane %v1511, 2
    %v1528 = vsel %vm1513, %v1525, %v1527
    %v1529 = vrot.slane %v1512, 2
    %v1530 = vsel %vm1513, %v1527, %v1529
    %v1539 = vunpack.c.l.b16 %v1460
    %v1540 = vunpack.c.l.b16 %v1461
    %v1541 = vunpack.c.l.b16 %v1462
    %v1542 = vunpack.c.l.b16 %v1463
    %v1543 = vunpack.c.l.b16 %v1464
    %v1544 = vunpack.c.l.b16 %v1465
    %v1545 = vunpack.c.l.b16 %v1466
    %v1546 = vunpack.c.l.b16 %v1467
    %v1547 = vpack.c.b16 %v1540, %v1539
    %v1548 = vpack.c.b16 %v1542, %v1541
    %v1549 = vpack.c.b16 %v1544, %v1543
    %v1550 = vpack.c.b16 %v1546, %v1545
    %v1556 = vsel %vm213, %v1516, 0
    %v1559 = vsel %vm213, %v1518, 0
    %v1562 = vsel %vm213, %v1520, 0
    %v1565 = vsel %vm213, %v1522, 0
    %v1568 = vsel %vm213, %v1524, 0
    %v1571 = vsel %vm213, %v1526, 0
    %v1574 = vsel %vm213, %v1528, 0
    %v1577 = vsel %vm213, %v1530, 0
    %v1580 = vsel %vm213, %v1529, 0
    %1582 = vmatprep.subr.bf16.mxu0 0
    %1583 = vmatpush1.bf16.msra.mxu0 0
    %1584 = vmatprep.subr.bf16.mxu0 0
    %1585 = vmatpush1.bf16.msra.mxu0 0
    %1586 = vmatprep.subr.bf16.mxu0 0
    %1587 = vmatpush1.bf16.msra.mxu0 0
    %1588 = vmatprep.subr.bf16.mxu0 0
    %1589 = vmatpush1.bf16.msra.mxu0 0
    %1590 = vmatprep.subr.bf16.mxu0 0
    %1591 = vmatpush1.bf16.msra.mxu0 %v1550
    %1592 = vmatprep.subr.bf16.mxu0 0
    %1593 = vmatpush1.bf16.msra.mxu0 %v1549
    %1594 = vmatprep.subr.bf16.mxu0 0
    %1595 = vmatpush1.bf16.msra.mxu0 %v1548
    %1596 = vmatprep.subr.bf16.mxu0 0
    %1597 = vmatpush1.bf16.msra.mxu0 %v1547
    %1598 = vmatprep.subr.bf16.mxu0 0
    %1599 = vmatpush2.bf16.msra.mxu0 0
    %1600 = vmatprep.subr.bf16.mxu0 0
    %1601 = vmatpush2.bf16.msra.mxu0 0
    %1602 = vmatprep.subr.bf16.mxu0 0
    %1603 = vmatpush2.bf16.msra.mxu0 0
    %1604 = vmatprep.subr.bf16.mxu0 0
    %1605 = vmatpush2.bf16.msra.mxu0 0
    %1606 = vmatprep.subr.bf16.mxu0 0
    %1607 = vmatpush2.bf16.msra.mxu0 0
    %1608 = vmatprep.subr.bf16.mxu0 0
    %1609 = vmatpush2.bf16.msra.mxu0 0
    %1610 = vmatprep.subr.bf16.mxu0 0
    %1611 = vmatpush2.bf16.msra.mxu0 0
    %1612 = vmatprep.subr.bf16.mxu0 0
    %1613 = vmatpush2.bf16.msra.mxu0 0
    %1614 = vmatprep.mubr.bf16.mxu0 0
    %1615 = vmatmul.mubr.bf16.gmra.mxu0 %v1556
    %v1616 = vpop.f32.mrf.mxu0
    %v1617 = vadd.f32 0.0, %v1616
    %v1618 = vpop.f32.mrf.mxu0
    %v1619 = vpop.f32.mrf.mxu0
    %v1620 = vadd.f32 0.0, %v1619
    %v1621 = vpop.f32.mrf.mxu0
    %1622 = vmatprep.mubr.bf16.mxu0 0
    %1623 = vmatmul.mubr.bf16.gmra.mxu0 %v1559
    %v1624 = vpop.f32.mrf.mxu0
    %v1625 = vadd.f32 0.0, %v1624
    %v1626 = vpop.f32.mrf.mxu0
    %v1627 = vpop.f32.mrf.mxu0
    %v1628 = vadd.f32 0.0, %v1627
    %v1629 = vpop.f32.mrf.mxu0
    %1630 = vmatprep.mubr.bf16.mxu0 0
    %1631 = vmatmul.mubr.bf16.gmra.mxu0 %v1562
    %v1632 = vpop.f32.mrf.mxu0
    %v1633 = vadd.f32 0.0, %v1632
    %v1634 = vpop.f32.mrf.mxu0
    %v1635 = vpop.f32.mrf.mxu0
    %v1636 = vadd.f32 0.0, %v1635
    %v1637 = vpop.f32.mrf.mxu0
    %1638 = vmatprep.mubr.bf16.mxu0 0
    %1639 = vmatmul.mubr.bf16.gmra.mxu0 %v1565
    %v1640 = vpop.f32.mrf.mxu0
    %v1641 = vadd.f32 0.0, %v1640
    %v1642 = vpop.f32.mrf.mxu0
    %v1643 = vpop.f32.mrf.mxu0
    %v1644 = vadd.f32 0.0, %v1643
    %v1645 = vpop.f32.mrf.mxu0
    %1646 = vmatprep.mubr.bf16.mxu0 0
    %1647 = vmatmul.mubr.bf16.gmra.mxu0 %v1568
    %v1648 = vpop.f32.mrf.mxu0
    %v1649 = vadd.f32 0.0, %v1648
    %v1650 = vpop.f32.mrf.mxu0
    %v1651 = vpop.f32.mrf.mxu0
    %v1652 = vadd.f32 0.0, %v1651
    %v1653 = vpop.f32.mrf.mxu0
    %1654 = vmatprep.mubr.bf16.mxu0 0
    %1655 = vmatmul.mubr.bf16.gmra.mxu0 %v1571
    %v1656 = vpop.f32.mrf.mxu0
    %v1657 = vadd.f32 0.0, %v1656
    %v1658 = vpop.f32.mrf.mxu0
    %v1659 = vpop.f32.mrf.mxu0
    %v1660 = vadd.f32 0.0, %v1659
    %v1661 = vpop.f32.mrf.mxu0
    %1662 = vmatprep.mubr.bf16.mxu0 0
    %1663 = vmatmul.mubr.bf16.gmra.mxu0 %v1574
    %v1664 = vpop.f32.mrf.mxu0
    %v1665 = vadd.f32 0.0, %v1664
    %v1666 = vpop.f32.mrf.mxu0
    %v1667 = vpop.f32.mrf.mxu0
    %v1668 = vadd.f32 0.0, %v1667
    %v1669 = vpop.f32.mrf.mxu0
    %1670 = vmatprep.mubr.bf16.mxu0 0
    %1671 = vmatmul.mubr.bf16.gmra.mxu0 %v1577
    %v1672 = vpop.f32.mrf.mxu0
    %v1673 = vadd.f32 0.0, %v1672
    %v1674 = vpop.f32.mrf.mxu0
    %v1675 = vpop.f32.mrf.mxu0
    %v1676 = vadd.f32 0.0, %v1675
    %v1677 = vpop.f32.mrf.mxu0
    %1678 = vmatprep.mubr.bf16.mxu0 0
    %1679 = vmatmul.mubr.bf16.gmra.mxu0 %v1580
    %v1680 = vpop.f32.mrf.mxu0
    %v1681 = vadd.f32 0.0, %v1680
    %v1682 = vpop.f32.mrf.mxu0
    %v1683 = vpop.f32.mrf.mxu0
    %v1684 = vadd.f32 0.0, %v1683
    %v1685 = vpop.f32.mrf.mxu0
    %1686 = vdwg.mxu0
    %v1687 = vadd.f32 %v1423, %v1617
    %v1688 = vadd.f32 %v1424, %v1620
    %v1689 = vadd.f32 %v1425, %v1625
    %v1690 = vadd.f32 %v1426, %v1628
    %v1691 = vadd.f32 %v1427, %v1633
    %v1692 = vadd.f32 %v1428, %v1636
    %v1693 = vadd.f32 %v1429, %v1641
    %v1694 = vadd.f32 %v1430, %v1644
    %v1695 = vadd.f32 %v1431, %v1649
    %v1696 = vadd.f32 %v1432, %v1652
    %v1697 = vadd.f32 %v1433, %v1657
    %v1698 = vadd.f32 %v1434, %v1660
    %v1699 = vadd.f32 %v1435, %v1665
    %v1700 = vadd.f32 %v1436, %v1668
    %v1701 = vadd.f32 %v1437, %v1673
    %v1702 = vadd.f32 %v1438, %v1676
    %v1703 = vadd.f32 %v1439, %v1681
    %v1704 = vadd.f32 %v1440, %v1684
    %v1705 = vld [vmem:[%s0 + $0xc] sm:$0xc]
    %v1706 = vld [vmem:[%s0 + $0x10] sm:$0xf]
    %v1707 = vld [vmem:[%s0 + $0x14] sm:$0xf]
    %v1708 = vld [vmem:[%s0 + $0x18] sm:$0xf]
    %v1709 = vld [vmem:[%s0 + $0x1c] sm:$0xf]
    %v1710 = vld [vmem:[%s0 + $0x20] sm:$0xf]
    %v1711 = vld [vmem:[%s0 + $0x24] sm:$0xf]
    %v1712 = vld [vmem:[%s0 + $0x28] sm:$0xf]
    %v1713 = vld [vmem:[%s0 + $0x2c] sm:$0xf]
    %v1714 = vld [vmem:[%s0 + $0x30] sm:$0xf]
    %v1715 = vld [vmem:[%s0 + $0x34] sm:$0xf]
    %v1716 = vld [vmem:[%s0 + $0x38] sm:$0xf]
    %v1717 = vld [vmem:[%s0 + $0x3c] sm:$0xf]
    %v1718 = vld [vmem:[%s0 + $0x40] sm:$0xf]
    %v1719 = vld [vmem:[%s0 + $0x44] sm:$0xf]
    %v1720 = vld [vmem:[%s0 + $0x48] sm:$0xf]
    %v1721 = vld [vmem:[%s0 + $0x4c] sm:$0xf]
    %v1722 = vld [vmem:[%s0 + $0x50] sm:$0xf]
    %v1723 = vld [vmem:[%s0 + $0x54] sm:$0x1]
    %s1724 = scalar_lea.vmem [#allocation2], 224
    %v1725 = vld [vmem:[%s1724] sm:$0xf]
    %v1726 = vld [vmem:[%s1724 + $0x4] sm:$0xf]
    %v1727 = vld [vmem:[%s1724 + $0x8] sm:$0xf]
    %v1728 = vld [vmem:[%s1724 + $0xc] sm:$0xf]
    %v1729 = vld [vmem:[%s1724 + $0x10] sm:$0xf]
    %v1730 = vld [vmem:[%s1724 + $0x14] sm:$0xf]
    %v1731 = vld [vmem:[%s1724 + $0x18] sm:$0xf]
    %v1732 = vld [vmem:[%s1724 + $0x1c] sm:$0xf]
    %v1752 = vunpack.c.l.b16 %v1705
    %v1753 = vunpack.c.l.b16 %v1706
    %v1754 = vunpack.c.l.b16 %v1707
    %v1755 = vunpack.c.l.b16 %v1708
    %v1756 = vunpack.c.l.b16 %v1709
    %v1757 = vunpack.c.l.b16 %v1710
    %v1758 = vunpack.c.l.b16 %v1711
    %v1759 = vunpack.c.l.b16 %v1712
    %v1760 = vunpack.c.l.b16 %v1713
    %v1761 = vunpack.c.l.b16 %v1714
    %v1762 = vunpack.c.l.b16 %v1715
    %v1763 = vunpack.c.l.b16 %v1716
    %v1764 = vunpack.c.l.b16 %v1717
    %v1765 = vunpack.c.l.b16 %v1718
    %v1766 = vunpack.c.l.b16 %v1719
    %v1767 = vunpack.c.l.b16 %v1720
    %v1768 = vunpack.c.l.b16 %v1721
    %v1769 = vunpack.c.l.b16 %v1722
    %v1770 = vunpack.c.l.b16 %v1723
    %v1771 = vpack.c.b16 %v1753, %v1752
    %v1772 = vpack.c.b16 %v1755, %v1754
    %v1773 = vpack.c.b16 %v1757, %v1756
    %v1774 = vpack.c.b16 %v1759, %v1758
    %v1775 = vpack.c.b16 %v1761, %v1760
    %v1776 = vpack.c.b16 %v1763, %v1762
    %v1777 = vpack.c.b16 %v1765, %v1764
    %v1778 = vpack.c.b16 %v1767, %v1766
    %v1779 = vpack.c.b16 %v1769, %v1768
    %v1780 = vpack.c.b16 %v1770, %v1770
    %vm1781 = vsmask.f32 5376
    %v1783 = vshrl.u32 %v1771, 16
    %v1785 = vrot.slane %v1783, 2
    %v1786 = vshll.u32 %v1771, 16
    %v1788 = vrot.slane %v1786, 3
    %v1789 = vor.u32 %v1785, %v1788
    %v1791 = vshrl.u32 %v1772, 16
    %v1793 = vrot.slane %v1791, 2
    %v1794 = vshll.u32 %v1772, 16
    %v1796 = vrot.slane %v1794, 3
    %v1797 = vor.u32 %v1793, %v1796
    %v1798 = vsel %vm1781, %v1789, %v1797
    %v1800 = vshrl.u32 %v1773, 16
    %v1802 = vrot.slane %v1800, 2
    %v1803 = vshll.u32 %v1773, 16
    %v1805 = vrot.slane %v1803, 3
    %v1806 = vor.u32 %v1802, %v1805
    %v1807 = vsel %vm1781, %v1797, %v1806
    %v1809 = vshrl.u32 %v1774, 16
    %v1811 = vrot.slane %v1809, 2
    %v1812 = vshll.u32 %v1774, 16
    %v1814 = vrot.slane %v1812, 3
    %v1815 = vor.u32 %v1811, %v1814
    %v1816 = vsel %vm1781, %v1806, %v1815
    %v1818 = vshrl.u32 %v1775, 16
    %v1820 = vrot.slane %v1818, 2
    %v1821 = vshll.u32 %v1775, 16
    %v1823 = vrot.slane %v1821, 3
    %v1824 = vor.u32 %v1820, %v1823
    %v1825 = vsel %vm1781, %v1815, %v1824
    %v1827 = vshrl.u32 %v1776, 16
    %v1829 = vrot.slane %v1827, 2
    %v1830 = vshll.u32 %v1776, 16
    %v1832 = vrot.slane %v1830, 3
    %v1833 = vor.u32 %v1829, %v1832
    %v1834 = vsel %vm1781, %v1824, %v1833
    %v1836 = vshrl.u32 %v1777, 16
    %v1838 = vrot.slane %v1836, 2
    %v1839 = vshll.u32 %v1777, 16
    %v1841 = vrot.slane %v1839, 3
    %v1842 = vor.u32 %v1838, %v1841
    %v1843 = vsel %vm1781, %v1833, %v1842
    %v1845 = vshrl.u32 %v1778, 16
    %v1847 = vrot.slane %v1845, 2
    %v1848 = vshll.u32 %v1778, 16
    %v1850 = vrot.slane %v1848, 3
    %v1851 = vor.u32 %v1847, %v1850
    %v1852 = vsel %vm1781, %v1842, %v1851
    %v1854 = vshrl.u32 %v1779, 16
    %v1856 = vrot.slane %v1854, 2
    %v1857 = vshll.u32 %v1779, 16
    %v1859 = vrot.slane %v1857, 3
    %v1860 = vor.u32 %v1856, %v1859
    %v1861 = vsel %vm1781, %v1851, %v1860
    %v1863 = vshll.u32 %v1780, 16
    %v1865 = vrot.slane %v1863, 3
    %v1866 = vsel %vm1781, %v1860, %v1865
    %v1875 = vunpack.c.l.b16 %v1725
    %v1876 = vunpack.c.l.b16 %v1726
    %v1877 = vunpack.c.l.b16 %v1727
    %v1878 = vunpack.c.l.b16 %v1728
    %v1879 = vunpack.c.l.b16 %v1729
    %v1880 = vunpack.c.l.b16 %v1730
    %v1881 = vunpack.c.l.b16 %v1731
    %v1882 = vunpack.c.l.b16 %v1732
    %v1883 = vpack.c.b16 %v1876, %v1875
    %v1884 = vpack.c.b16 %v1878, %v1877
    %v1885 = vpack.c.b16 %v1880, %v1879
    %v1886 = vpack.c.b16 %v1882, %v1881
    %v1892 = vsel %vm213, %v1798, 0
    %v1895 = vsel %vm213, %v1807, 0
    %v1898 = vsel %vm213, %v1816, 0
    %v1901 = vsel %vm213, %v1825, 0
    %v1904 = vsel %vm213, %v1834, 0
    %v1907 = vsel %vm213, %v1843, 0
    %v1910 = vsel %vm213, %v1852, 0
    %v1913 = vsel %vm213, %v1861, 0
    %v1916 = vsel %vm213, %v1866, 0
    %1918 = vmatprep.subr.bf16.mxu0 0
    %1919 = vmatpush1.bf16.msra.mxu0 0
    %1920 = vmatprep.subr.bf16.mxu0 0
    %1921 = vmatpush1.bf16.msra.mxu0 0
    %1922 = vmatprep.subr.bf16.mxu0 0
    %1923 = vmatpush1.bf16.msra.mxu0 0
    %1924 = vmatprep.subr.bf16.mxu0 0
    %1925 = vmatpush1.bf16.msra.mxu0 0
    %1926 = vmatprep.subr.bf16.mxu0 0
    %1927 = vmatpush1.bf16.msra.mxu0 %v1886
    %1928 = vmatprep.subr.bf16.mxu0 0
    %1929 = vmatpush1.bf16.msra.mxu0 %v1885
    %1930 = vmatprep.subr.bf16.mxu0 0
    %1931 = vmatpush1.bf16.msra.mxu0 %v1884
    %1932 = vmatprep.subr.bf16.mxu0 0
    %1933 = vmatpush1.bf16.msra.mxu0 %v1883
    %1934 = vmatprep.subr.bf16.mxu0 0
    %1935 = vmatpush2.bf16.msra.mxu0 0
    %1936 = vmatprep.subr.bf16.mxu0 0
    %1937 = vmatpush2.bf16.msra.mxu0 0
    %1938 = vmatprep.subr.bf16.mxu0 0
    %1939 = vmatpush2.bf16.msra.mxu0 0
    %1940 = vmatprep.subr.bf16.mxu0 0
    %1941 = vmatpush2.bf16.msra.mxu0 0
    %1942 = vmatprep.subr.bf16.mxu0 0
    %1943 = vmatpush2.bf16.msra.mxu0 0
    %1944 = vmatprep.subr.bf16.mxu0 0
    %1945 = vmatpush2.bf16.msra.mxu0 0
    %1946 = vmatprep.subr.bf16.mxu0 0
    %1947 = vmatpush2.bf16.msra.mxu0 0
    %1948 = vmatprep.subr.bf16.mxu0 0
    %1949 = vmatpush2.bf16.msra.mxu0 0
    %1950 = vmatprep.mubr.bf16.mxu0 0
    %1951 = vmatmul.mubr.bf16.gmra.mxu0 %v1892
    %v1952 = vpop.f32.mrf.mxu0
    %v1953 = vadd.f32 0.0, %v1952
    %v1954 = vpop.f32.mrf.mxu0
    %v1955 = vpop.f32.mrf.mxu0
    %v1956 = vadd.f32 0.0, %v1955
    %v1957 = vpop.f32.mrf.mxu0
    %1958 = vmatprep.mubr.bf16.mxu0 0
    %1959 = vmatmul.mubr.bf16.gmra.mxu0 %v1895
    %v1960 = vpop.f32.mrf.mxu0
    %v1961 = vadd.f32 0.0, %v1960
    %v1962 = vpop.f32.mrf.mxu0
    %v1963 = vpop.f32.mrf.mxu0
    %v1964 = vadd.f32 0.0, %v1963
    %v1965 = vpop.f32.mrf.mxu0
    %1966 = vmatprep.mubr.bf16.mxu0 0
    %1967 = vmatmul.mubr.bf16.gmra.mxu0 %v1898
    %v1968 = vpop.f32.mrf.mxu0
    %v1969 = vadd.f32 0.0, %v1968
    %v1970 = vpop.f32.mrf.mxu0
    %v1971 = vpop.f32.mrf.mxu0
    %v1972 = vadd.f32 0.0, %v1971
    %v1973 = vpop.f32.mrf.mxu0
    %1974 = vmatprep.mubr.bf16.mxu0 0
    %1975 = vmatmul.mubr.bf16.gmra.mxu0 %v1901
    %v1976 = vpop.f32.mrf.mxu0
    %v1977 = vadd.f32 0.0, %v1976
    %v1978 = vpop.f32.mrf.mxu0
    %v1979 = vpop.f32.mrf.mxu0
    %v1980 = vadd.f32 0.0, %v1979
    %v1981 = vpop.f32.mrf.mxu0
    %1982 = vmatprep.mubr.bf16.mxu0 0
    %1983 = vmatmul.mubr.bf16.gmra.mxu0 %v1904
    %v1984 = vpop.f32.mrf.mxu0
    %v1985 = vadd.f32 0.0, %v1984
    %v1986 = vpop.f32.mrf.mxu0
    %v1987 = vpop.f32.mrf.mxu0
    %v1988 = vadd.f32 0.0, %v1987
    %v1989 = vpop.f32.mrf.mxu0
    %1990 = vmatprep.mubr.bf16.mxu0 0
    %1991 = vmatmul.mubr.bf16.gmra.mxu0 %v1907
    %v1992 = vpop.f32.mrf.mxu0
    %v1993 = vadd.f32 0.0, %v1992
    %v1994 = vpop.f32.mrf.mxu0
    %v1995 = vpop.f32.mrf.mxu0
    %v1996 = vadd.f32 0.0, %v1995
    %v1997 = vpop.f32.mrf.mxu0
    %1998 = vmatprep.mubr.bf16.mxu0 0
    %1999 = vmatmul.mubr.bf16.gmra.mxu0 %v1910
    %v2000 = vpop.f32.mrf.mxu0
    %v2001 = vadd.f32 0.0, %v2000
    %v2002 = vpop.f32.mrf.mxu0
    %v2003 = vpop.f32.mrf.mxu0
    %v2004 = vadd.f32 0.0, %v2003
    %v2005 = vpop.f32.mrf.mxu0
    %2006 = vmatprep.mubr.bf16.mxu0 0
    %2007 = vmatmul.mubr.bf16.gmra.mxu0 %v1913
    %v2008 = vpop.f32.mrf.mxu0
    %v2009 = vadd.f32 0.0, %v2008
    %v2010 = vpop.f32.mrf.mxu0
    %v2011 = vpop.f32.mrf.mxu0
    %v2012 = vadd.f32 0.0, %v2011
    %v2013 = vpop.f32.mrf.mxu0
    %2014 = vmatprep.mubr.bf16.mxu0 0
    %2015 = vmatmul.mubr.bf16.gmra.mxu0 %v1916
    %v2016 = vpop.f32.mrf.mxu0
    %v2017 = vadd.f32 0.0, %v2016
    %v2018 = vpop.f32.mrf.mxu0
    %v2019 = vpop.f32.mrf.mxu0
    %v2020 = vadd.f32 0.0, %v2019
    %v2021 = vpop.f32.mrf.mxu0
    %2022 = vdwg.mxu0
    %v2023 = vadd.f32 %v1687, %v1953
    %v2024 = vadd.f32 %v1688, %v1956
    %v2025 = vadd.f32 %v1689, %v1961
    %v2026 = vadd.f32 %v1690, %v1964
    %v2027 = vadd.f32 %v1691, %v1969
    %v2028 = vadd.f32 %v1692, %v1972
    %v2029 = vadd.f32 %v1693, %v1977
    %v2030 = vadd.f32 %v1694, %v1980
    %v2031 = vadd.f32 %v1695, %v1985
    %v2032 = vadd.f32 %v1696, %v1988
    %v2033 = vadd.f32 %v1697, %v1993
    %v2034 = vadd.f32 %v1698, %v1996
    %v2035 = vadd.f32 %v1699, %v2001
    %v2036 = vadd.f32 %v1700, %v2004
    %v2037 = vadd.f32 %v1701, %v2009
    %v2038 = vadd.f32 %v1702, %v2012
    %v2039 = vadd.f32 %v1703, %v2017
    %v2040 = vadd.f32 %v1704, %v2020
    %v2041 = vld [vmem:[%s0 + $0xc] sm:$0x8]
    %s2042 = scalar_lea.vmem [#allocation2], 256
    %v2043 = vld [vmem:[%s2042] sm:$0xf]
    %v2044 = vld [vmem:[%s2042 + $0x4] sm:$0xf]
    %v2045 = vld [vmem:[%s2042 + $0x8] sm:$0xf]
    %v2046 = vld [vmem:[%s2042 + $0xc] sm:$0xf]
    %v2047 = vld [vmem:[%s2042 + $0x10] sm:$0xf]
    %v2048 = vld [vmem:[%s2042 + $0x14] sm:$0xf]
    %v2049 = vld [vmem:[%s2042 + $0x18] sm:$0xf]
    %v2050 = vld [vmem:[%s2042 + $0x1c] sm:$0xf]
    %v2052 = vunpack.c.l.b16 %v2041
    %v2053 = vpack.c.b16 %v1753, %v2052
    %v2054 = vrot.slane %v2053, 3
    %v2055 = vrot.slane %v1772, 3
    %v2056 = vsel %vm778, %v2054, %v2055
    %v2057 = vrot.slane %v1773, 3
    %v2058 = vsel %vm778, %v2055, %v2057
    %v2059 = vrot.slane %v1774, 3
    %v2060 = vsel %vm778, %v2057, %v2059
    %v2061 = vrot.slane %v1775, 3
    %v2062 = vsel %vm778, %v2059, %v2061
    %v2063 = vrot.slane %v1776, 3
    %v2064 = vsel %vm778, %v2061, %v2063
    %v2065 = vrot.slane %v1777, 3
    %v2066 = vsel %vm778, %v2063, %v2065
    %v2067 = vrot.slane %v1778, 3
    %v2068 = vsel %vm778, %v2065, %v2067
    %v2069 = vrot.slane %v1779, 3
    %v2070 = vsel %vm778, %v2067, %v2069
    %v2071 = vrot.slane %v1780, 3
    %v2072 = vsel %vm778, %v2069, %v2071
    %v2081 = vunpack.c.l.b16 %v2043
    %v2082 = vunpack.c.l.b16 %v2044
    %v2083 = vunpack.c.l.b16 %v2045
    %v2084 = vunpack.c.l.b16 %v2046
    %v2085 = vunpack.c.l.b16 %v2047
    %v2086 = vunpack.c.l.b16 %v2048
    %v2087 = vunpack.c.l.b16 %v2049
    %v2088 = vunpack.c.l.b16 %v2050
    %v2089 = vpack.c.b16 %v2082, %v2081
    %v2090 = vpack.c.b16 %v2084, %v2083
    %v2091 = vpack.c.b16 %v2086, %v2085
    %v2092 = vpack.c.b16 %v2088, %v2087
    %v2098 = vsel %vm213, %v2056, 0
    %v2101 = vsel %vm213, %v2058, 0
    %v2104 = vsel %vm213, %v2060, 0
    %v2107 = vsel %vm213, %v2062, 0
    %v2110 = vsel %vm213, %v2064, 0
    %v2113 = vsel %vm213, %v2066, 0
    %v2116 = vsel %vm213, %v2068, 0
    %v2119 = vsel %vm213, %v2070, 0
    %v2122 = vsel %vm213, %v2072, 0
    %2124 = vmatprep.subr.bf16.mxu0 0
    %2125 = vmatpush1.bf16.msra.mxu0 0
    %2126 = vmatprep.subr.bf16.mxu0 0
    %2127 = vmatpush1.bf16.msra.mxu0 0
    %2128 = vmatprep.subr.bf16.mxu0 0
    %2129 = vmatpush1.bf16.msra.mxu0 0
    %2130 = vmatprep.subr.bf16.mxu0 0
    %2131 = vmatpush1.bf16.msra.mxu0 0
    %2132 = vmatprep.subr.bf16.mxu0 0
    %2133 = vmatpush1.bf16.msra.mxu0 %v2092
    %2134 = vmatprep.subr.bf16.mxu0 0
    %2135 = vmatpush1.bf16.msra.mxu0 %v2091
    %2136 = vmatprep.subr.bf16.mxu0 0
    %2137 = vmatpush1.bf16.msra.mxu0 %v2090
    %2138 = vmatprep.subr.bf16.mxu0 0
    %2139 = vmatpush1.bf16.msra.mxu0 %v2089
    %2140 = vmatprep.subr.bf16.mxu0 0
    %2141 = vmatpush2.bf16.msra.mxu0 0
    %2142 = vmatprep.subr.bf16.mxu0 0
    %2143 = vmatpush2.bf16.msra.mxu0 0
    %2144 = vmatprep.subr.bf16.mxu0 0
    %2145 = vmatpush2.bf16.msra.mxu0 0
    %2146 = vmatprep.subr.bf16.mxu0 0
    %2147 = vmatpush2.bf16.msra.mxu0 0
    %2148 = vmatprep.subr.bf16.mxu0 0
    %2149 = vmatpush2.bf16.msra.mxu0 0
    %2150 = vmatprep.subr.bf16.mxu0 0
    %2151 = vmatpush2.bf16.msra.mxu0 0
    %2152 = vmatprep.subr.bf16.mxu0 0
    %2153 = vmatpush2.bf16.msra.mxu0 0
    %2154 = vmatprep.subr.bf16.mxu0 0
    %2155 = vmatpush2.bf16.msra.mxu0 0
    %2156 = vmatprep.mubr.bf16.mxu0 0
    %2157 = vmatmul.mubr.bf16.gmra.mxu0 %v2098
    %v2158 = vpop.f32.mrf.mxu0
    %v2159 = vadd.f32 0.0, %v2158
    %v2160 = vpop.f32.mrf.mxu0
    %v2161 = vpop.f32.mrf.mxu0
    %v2162 = vadd.f32 0.0, %v2161
    %v2163 = vpop.f32.mrf.mxu0
    %2164 = vmatprep.mubr.bf16.mxu0 0
    %2165 = vmatmul.mubr.bf16.gmra.mxu0 %v2101
    %v2166 = vpop.f32.mrf.mxu0
    %v2167 = vadd.f32 0.0, %v2166
    %v2168 = vpop.f32.mrf.mxu0
    %v2169 = vpop.f32.mrf.mxu0
    %v2170 = vadd.f32 0.0, %v2169
    %v2171 = vpop.f32.mrf.mxu0
    %2172 = vmatprep.mubr.bf16.mxu0 0
    %2173 = vmatmul.mubr.bf16.gmra.mxu0 %v2104
    %v2174 = vpop.f32.mrf.mxu0
    %v2175 = vadd.f32 0.0, %v2174
    %v2176 = vpop.f32.mrf.mxu0
    %v2177 = vpop.f32.mrf.mxu0
    %v2178 = vadd.f32 0.0, %v2177
    %v2179 = vpop.f32.mrf.mxu0
    %2180 = vmatprep.mubr.bf16.mxu0 0
    %2181 = vmatmul.mubr.bf16.gmra.mxu0 %v2107
    %v2182 = vpop.f32.mrf.mxu0
    %v2183 = vadd.f32 0.0, %v2182
    %v2184 = vpop.f32.mrf.mxu0
    %v2185 = vpop.f32.mrf.mxu0
    %v2186 = vadd.f32 0.0, %v2185
    %v2187 = vpop.f32.mrf.mxu0
    %2188 = vmatprep.mubr.bf16.mxu0 0
    %2189 = vmatmul.mubr.bf16.gmra.mxu0 %v2110
    %v2190 = vpop.f32.mrf.mxu0
    %v2191 = vadd.f32 0.0, %v2190
    %v2192 = vpop.f32.mrf.mxu0
    %v2193 = vpop.f32.mrf.mxu0
    %v2194 = vadd.f32 0.0, %v2193
    %v2195 = vpop.f32.mrf.mxu0
    %2196 = vmatprep.mubr.bf16.mxu0 0
    %2197 = vmatmul.mubr.bf16.gmra.mxu0 %v2113
    %v2198 = vpop.f32.mrf.mxu0
    %v2199 = vadd.f32 0.0, %v2198
    %v2200 = vpop.f32.mrf.mxu0
    %v2201 = vpop.f32.mrf.mxu0
    %v2202 = vadd.f32 0.0, %v2201
    %v2203 = vpop.f32.mrf.mxu0
    %2204 = vmatprep.mubr.bf16.mxu0 0
    %2205 = vmatmul.mubr.bf16.gmra.mxu0 %v2116
    %v2206 = vpop.f32.mrf.mxu0
    %v2207 = vadd.f32 0.0, %v2206
    %v2208 = vpop.f32.mrf.mxu0
    %v2209 = vpop.f32.mrf.mxu0
    %v2210 = vadd.f32 0.0, %v2209
    %v2211 = vpop.f32.mrf.mxu0
    %2212 = vmatprep.mubr.bf16.mxu0 0
    %2213 = vmatmul.mubr.bf16.gmra.mxu0 %v2119
    %v2214 = vpop.f32.mrf.mxu0
    %v2215 = vadd.f32 0.0, %v2214
    %v2216 = vpop.f32.mrf.mxu0
    %v2217 = vpop.f32.mrf.mxu0
    %v2218 = vadd.f32 0.0, %v2217
    %v2219 = vpop.f32.mrf.mxu0
    %2220 = vmatprep.mubr.bf16.mxu0 0
    %2221 = vmatmul.mubr.bf16.gmra.mxu0 %v2122
    %v2222 = vpop.f32.mrf.mxu0
    %v2223 = vadd.f32 0.0, %v2222
    %v2224 = vpop.f32.mrf.mxu0
    %v2225 = vpop.f32.mrf.mxu0
    %v2226 = vadd.f32 0.0, %v2225
    %v2227 = vpop.f32.mrf.mxu0
    %2228 = vdwg.mxu0
    %v2229 = vadd.f32 %v2023, %v2159
    %v2230 = vadd.f32 %v2024, %v2162
    %v2231 = vadd.f32 %v2025, %v2167
    %v2232 = vadd.f32 %v2026, %v2170
    %v2233 = vadd.f32 %v2027, %v2175
    %v2234 = vadd.f32 %v2028, %v2178
    %v2235 = vadd.f32 %v2029, %v2183
    %v2236 = vadd.f32 %v2030, %v2186
    %v2237 = vadd.f32 %v2031, %v2191
    %v2238 = vadd.f32 %v2032, %v2194
    %v2239 = vadd.f32 %v2033, %v2199
    %v2240 = vadd.f32 %v2034, %v2202
    %v2241 = vadd.f32 %v2035, %v2207
    %v2242 = vadd.f32 %v2036, %v2210
    %v2243 = vadd.f32 %v2037, %v2215
    %v2244 = vadd.f32 %v2038, %v2218
    %v2245 = vadd.f32 %v2039, %v2223
    %v2246 = vadd.f32 %v2040, %v2226
    %v2247 = vld [vmem:[%s4] sm:$0xf]
    %v2248 = vld [vmem:[%s4 + $0x4] sm:$0xf]
    %v2249 = vld [vmem:[%s4 + $0x8] sm:$0xf]
    %v2250 = vld [vmem:[%s4 + $0xc] sm:$0xf]
    %v2251 = vld [vmem:[%s4 + $0x10] sm:$0xf]
    %v2252 = vld [vmem:[%s4 + $0x14] sm:$0xf]
    %v2253 = vld [vmem:[%s4 + $0x18] sm:$0xf]
    %v2254 = vld [vmem:[%s4 + $0x1c] sm:$0xf]
    %v2255 = vld [vmem:[%s4 + $0x20] sm:$0xf]
    %v2256 = vld [vmem:[%s4 + $0x24] sm:$0xf]
    %v2257 = vld [vmem:[%s4 + $0x28] sm:$0xf]
    %v2258 = vld [vmem:[%s4 + $0x2c] sm:$0xf]
    %v2259 = vld [vmem:[%s4 + $0x30] sm:$0xf]
    %v2260 = vld [vmem:[%s4 + $0x34] sm:$0xf]
    %v2261 = vld [vmem:[%s4 + $0x38] sm:$0xf]
    %v2262 = vld [vmem:[%s4 + $0x3c] sm:$0xf]
    %v2263 = vld [vmem:[%s4 + $0x40] sm:$0xf]
    %v2264 = vld [vmem:[%s4 + $0x44] sm:$0x3]
    %v2265 = vunpack.c.l.bf16 %v2247
    %v2266 = vunpack.c.l.bf16 %v2248
    %v2267 = vunpack.c.l.bf16 %v2249
    %v2268 = vunpack.c.l.bf16 %v2250
    %v2269 = vunpack.c.l.bf16 %v2251
    %v2270 = vunpack.c.l.bf16 %v2252
    %v2271 = vunpack.c.l.bf16 %v2253
    %v2272 = vunpack.c.l.bf16 %v2254
    %v2273 = vunpack.c.l.bf16 %v2255
    %v2274 = vunpack.c.l.bf16 %v2256
    %v2275 = vunpack.c.l.bf16 %v2257
    %v2276 = vunpack.c.l.bf16 %v2258
    %v2277 = vunpack.c.l.bf16 %v2259
    %v2278 = vunpack.c.l.bf16 %v2260
    %v2279 = vunpack.c.l.bf16 %v2261
    %v2280 = vunpack.c.l.bf16 %v2262
    %v2281 = vunpack.c.l.bf16 %v2263
    %v2282 = vunpack.c.l.bf16 %v2264
    %v2283 = vadd.f32 %v2229, %v2265
    %v2284 = vadd.f32 %v2230, %v2266
    %v2285 = vadd.f32 %v2231, %v2267
    %v2286 = vadd.f32 %v2232, %v2268
    %v2287 = vadd.f32 %v2233, %v2269
    %v2288 = vadd.f32 %v2234, %v2270
    %v2289 = vadd.f32 %v2235, %v2271
    %v2290 = vadd.f32 %v2236, %v2272
    %v2291 = vadd.f32 %v2237, %v2273
    %v2292 = vadd.f32 %v2238, %v2274
    %v2293 = vadd.f32 %v2239, %v2275
    %v2294 = vadd.f32 %v2240, %v2276
    %v2295 = vadd.f32 %v2241, %v2277
    %v2296 = vadd.f32 %v2242, %v2278
    %v2297 = vadd.f32 %v2243, %v2279
    %v2298 = vadd.f32 %v2244, %v2280
    %v2299 = vadd.f32 %v2245, %v2281
    %v2300 = vadd.f32 %v2246, %v2282
    %v2301 = vld [vmem:[%s2] sm:$0x1]
    %v2303 = vlaneseq
    %v2304 = vshrl.u32 %v2303, 7
    %v2305 = vsub.s32 0, %v2304
    %v2306 = vrot.slane %v2301, %v2305
    %v2308 = vmul.f32 %v2283, %v2306
    %v2309 = vmul.f32 %v2284, %v2306
    %v2310 = vmul.f32 %v2285, %v2306
    %v2311 = vmul.f32 %v2286, %v2306
    %v2312 = vmul.f32 %v2287, %v2306
    %v2313 = vmul.f32 %v2288, %v2306
    %v2314 = vmul.f32 %v2289, %v2306
    %v2315 = vmul.f32 %v2290, %v2306
    %v2316 = vmul.f32 %v2291, %v2306
    %v2317 = vmul.f32 %v2292, %v2306
    %v2318 = vmul.f32 %v2293, %v2306
    %v2319 = vmul.f32 %v2294, %v2306
    %v2320 = vmul.f32 %v2295, %v2306
    %v2321 = vmul.f32 %v2296, %v2306
    %v2322 = vmul.f32 %v2297, %v2306
    %v2323 = vmul.f32 %v2298, %v2306
    %v2324 = vmul.f32 %v2299, %v2306
    %v2325 = vmul.f32 %v2300, %v2306
    %v2326 = vld [vmem:[%s3] sm:$0x1]
    %v2328 = vlaneseq
    %v2329 = vshrl.u32 %v2328, 7
    %v2330 = vsub.s32 0, %v2329
    %v2331 = vrot.slane %v2326, %v2330
    %v2333 = vadd.f32 %v2308, %v2331
    %v2334 = vadd.f32 %v2309, %v2331
    %v2335 = vadd.f32 %v2310, %v2331
    %v2336 = vadd.f32 %v2311, %v2331
    %v2337 = vadd.f32 %v2312, %v2331
    %v2338 = vadd.f32 %v2313, %v2331
    %v2339 = vadd.f32 %v2314, %v2331
    %v2340 = vadd.f32 %v2315, %v2331
    %v2341 = vadd.f32 %v2316, %v2331
    %v2342 = vadd.f32 %v2317, %v2331
    %v2343 = vadd.f32 %v2318, %v2331
    %v2344 = vadd.f32 %v2319, %v2331
    %v2345 = vadd.f32 %v2320, %v2331
    %v2346 = vadd.f32 %v2321, %v2331
    %v2347 = vadd.f32 %v2322, %v2331
    %v2348 = vadd.f32 %v2323, %v2331
    %v2349 = vadd.f32 %v2324, %v2331
    %v2350 = vadd.f32 %v2325, %v2331
    %v2351 = vmax.f32 %v2333, 0.0
    %v2352 = vmax.f32 %v2334, 0.0
    %v2353 = vmax.f32 %v2335, 0.0
    %v2354 = vmax.f32 %v2336, 0.0
    %v2355 = vmax.f32 %v2337, 0.0
    %v2356 = vmax.f32 %v2338, 0.0
    %v2357 = vmax.f32 %v2339, 0.0
    %v2358 = vmax.f32 %v2340, 0.0
    %v2359 = vmax.f32 %v2341, 0.0
    %v2360 = vmax.f32 %v2342, 0.0
    %v2361 = vmax.f32 %v2343, 0.0
    %v2362 = vmax.f32 %v2344, 0.0
    %v2363 = vmax.f32 %v2345, 0.0
    %v2364 = vmax.f32 %v2346, 0.0
    %v2365 = vmax.f32 %v2347, 0.0
    %v2366 = vmax.f32 %v2348, 0.0
    %v2367 = vmax.f32 %v2349, 0.0
    %v2368 = vmax.f32 %v2350, 0.0
    %v2369 = vpack.c.bf16 %v2352, %v2351
    %v2370 = vpack.c.bf16 %v2354, %v2353
    %v2371 = vpack.c.bf16 %v2356, %v2355
    %v2372 = vpack.c.bf16 %v2358, %v2357
    %v2373 = vpack.c.bf16 %v2360, %v2359
    %v2374 = vpack.c.bf16 %v2362, %v2361
    %v2375 = vpack.c.bf16 %v2364, %v2363
    %v2376 = vpack.c.bf16 %v2366, %v2365
    %v2377 = vpack.c.bf16 %v2368, %v2367
    %v2387 = vunpack.c.l.b16 %v2369
    %v2388 = vunpack.c.h.b16 %v2369
    %v2389 = vunpack.c.l.b16 %v2370
    %v2390 = vunpack.c.h.b16 %v2370
    %v2391 = vunpack.c.l.b16 %v2371
    %v2392 = vunpack.c.h.b16 %v2371
    %v2393 = vunpack.c.l.b16 %v2372
    %v2394 = vunpack.c.h.b16 %v2372
    %v2395 = vunpack.c.l.b16 %v2373
    %v2396 = vunpack.c.h.b16 %v2373
    %v2397 = vunpack.c.l.b16 %v2374
    %v2398 = vunpack.c.h.b16 %v2374
    %v2399 = vunpack.c.l.b16 %v2375
    %v2400 = vunpack.c.h.b16 %v2375
    %v2401 = vunpack.c.l.b16 %v2376
    %v2402 = vunpack.c.h.b16 %v2376
    %v2403 = vunpack.c.l.b16 %v2377
    %v2404 = vunpack.c.h.b16 %v2377
    %v2405 = vpack.c.b16 %v2387, %v2387
    %v2406 = vpack.c.b16 %v2388, %v2388
    %v2407 = vpack.c.b16 %v2389, %v2389
    %v2408 = vpack.c.b16 %v2390, %v2390
    %v2409 = vpack.c.b16 %v2391, %v2391
    %v2410 = vpack.c.b16 %v2392, %v2392
    %v2411 = vpack.c.b16 %v2393, %v2393
    %v2412 = vpack.c.b16 %v2394, %v2394
    %v2413 = vpack.c.b16 %v2395, %v2395
    %v2414 = vpack.c.b16 %v2396, %v2396
    %v2415 = vpack.c.b16 %v2397, %v2397
    %v2416 = vpack.c.b16 %v2398, %v2398
    %v2417 = vpack.c.b16 %v2399, %v2399
    %v2418 = vpack.c.b16 %v2400, %v2400
    %v2419 = vpack.c.b16 %v2401, %v2401
    %v2420 = vpack.c.b16 %v2402, %v2402
    %v2421 = vpack.c.b16 %v2403, %v2403
    %v2422 = vpack.c.b16 %v2404, %v2404
    %2441 = vst [vmem:[#allocation5] sm:$0xf] %v2405
    %2442 = vst [vmem:[#allocation5 + $0x4] sm:$0xf] %v2406
    %2443 = vst [vmem:[#allocation5 + $0x8] sm:$0xf] %v2407
    %2444 = vst [vmem:[#allocation5 + $0xc] sm:$0xf] %v2408
    %2445 = vst [vmem:[#allocation5 + $0x10] sm:$0xf] %v2409
    %2446 = vst [vmem:[#allocation5 + $0x14] sm:$0xf] %v2410
    %2447 = vst [vmem:[#allocation5 + $0x18] sm:$0xf] %v2411
    %2448 = vst [vmem:[#allocation5 + $0x1c] sm:$0xf] %v2412
    %2449 = vst [vmem:[#allocation5 + $0x20] sm:$0xf] %v2413
    %2450 = vst [vmem:[#allocation5 + $0x24] sm:$0xf] %v2414
    %2451 = vst [vmem:[#allocation5 + $0x28] sm:$0xf] %v2415
    %2452 = vst [vmem:[#allocation5 + $0x2c] sm:$0xf] %v2416
    %2453 = vst [vmem:[#allocation5 + $0x30] sm:$0xf] %v2417
    %2454 = vst [vmem:[#allocation5 + $0x34] sm:$0xf] %v2418
    %2455 = vst [vmem:[#allocation5 + $0x38] sm:$0xf] %v2419
    %2456 = vst [vmem:[#allocation5 + $0x3c] sm:$0xf] %v2420
    %2457 = vst [vmem:[#allocation5 + $0x40] sm:$0xf] %v2421
    %2458 = vst [vmem:[#allocation5 + $0x44] sm:$0x3] %v2422
    // Predicated region
    $region26: #{tpu_custom_call.1} parent=1 // pred_check
      _
    $region27: #{tpu_custom_call.1} parent=1 // pred_check_branch
      %2460 = sbr.rel (0) target = $region29
    $region28: #{tpu_custom_call.1} parent=1 // pred_region
      %s2462 = ssub.s32 1152, 1152
      %2463 = vsyncadd [#allocation4], %s2462
      %s2464 = sshll.u32 [#allocation5], 4
      %s2465 = int_to_ptr.vmem [resolvable:$true] %s2464
      %2470 = dma.vmem_to_hbm [thread:$0]  %s2465, 1152, %s5, [#allocation4], 64, 64, 4
    $region29: #{tpu_custom_call.1} parent=1 // pred_fallthru
      _
    // Predicated region
    $region30: #{tpu_custom_call.1} parent=1 // pred_check
      _
    $region31: #{tpu_custom_call.1} parent=1 // pred_check_branch
      %2472 = sbr.rel (0) target = $region33
    $region32: #{tpu_custom_call.1} parent=1 // pred_region
      %2473 = dma.done [#allocation4], 1152
    $region33: #{tpu_custom_call.1} parent=1 // pred_fallthru
      _
    %2474 = vsyncpa [#allocation3], 1
    %2475 = vsyncpa [#allocation4], 1

</llo_original>
